<compile_context>
chip_gen: v7x
topology: tpu7x:2x2x1
jax: 0.10.0
libtpu: 0.0.40
codegen_flags: <defaults>
</compile_context>

<pallas_src>
import functools

import jax
import jax.numpy as jnp
from jax.experimental import pallas as pl
from jax.experimental.pallas import tpu as pltpu

_LANE = 128
_TARGET_BLOCK_BYTES = 2 * 1024 * 1024     # ~2 MiB tiles: >=85% of HBM roofline, safe on v5e/v6e/v7x
_SPLIT_THRESHOLD_BYTES = 1 * 1024 * 1024  # above this, guarantee >=2 programs (v7x: 2 TCs share HBM)


# ---------------------------------------------------------------------------
# Portable (non-TPU / interpret-mode) normal noise: counter hash + Box-Muller.
# ---------------------------------------------------------------------------
def _hash_u32(x):
    """lowbias32 integer hash, elementwise uint32 -> uint32."""
    x = x ^ (x >> 16)
    x = x * jnp.uint32(0x7FEB352D)
    x = x ^ (x >> 15)
    x = x * jnp.uint32(0x846CA68B)
    x = x ^ (x >> 16)
    return x


def _jnp_normal(seed, block_id, shape):
    """Standard-normal noise of 2D `shape` using only portable jnp ops."""
    rows = jax.lax.broadcasted_iota(jnp.uint32, shape, 0)
    cols = jax.lax.broadcasted_iota(jnp.uint32, shape, 1)
    block_elems = jnp.uint32(shape[0] * shape[1])
    ctr = block_id.astype(jnp.uint32) * block_elems + rows * jnp.uint32(shape[1]) + cols
    ctr = ctr + seed.astype(jnp.uint32) * jnp.uint32(0x9E3779B9)
    b1 = _hash_u32(ctr)
    b2 = _hash_u32(b1 ^ jnp.uint32(0x85EBCA6B))
    u1 = ((b1 >> 8).astype(jnp.float32) + 1.0) * jnp.float32(1.0 / (1 << 24))  # (0, 1]
    u2 = (b2 >> 8).astype(jnp.float32) * jnp.float32(1.0 / (1 << 24))          # [0, 1)
    r = jnp.sqrt(jnp.float32(-2.0) * jnp.log(u1))
    return r * jnp.cos(jnp.float32(2.0 * 3.14159265358979) * u2)


# ---------------------------------------------------------------------------
# Kernel
# ---------------------------------------------------------------------------
def _noise_kernel(seed_ref, x_ref, o_ref, *, std, use_tpu_prng):
    if use_tpu_prng:
        # Hardware PRNG, reseeded per grid block (block id as second seed word)
        # so every tile draws an independent stream regardless of grid order.
        pltpu.prng_seed(seed_ref[0], pl.program_id(0))
        # TODO(synk): on v7x, verify from a bundle dump that stateful_normal's
        # EUP usage is not the binding slot at 3.2 TB/s; if it is, switch to
        # pltpu.prng_random_bits + a VPU-only normal transform.
        noise = pltpu.stateful_normal(x_ref.shape, jnp.float32)
    else:
        # Interpret / non-TPU fallback: portable counter-based Gaussian noise.
        noise = _jnp_normal(seed_ref[0], pl.program_id(0), x_ref.shape)
    y = x_ref[...].astype(jnp.float32) + jnp.float32(std) * noise
    o_ref[...] = y.astype(o_ref.dtype)


# ---------------------------------------------------------------------------
# Wrapper
# ---------------------------------------------------------------------------
def _choose_cols(n):
    # Widest lane-dense last dim that divides n exactly (n is a multiple of 128
    # when this is called, so it always returns without padding).
    for c in (4096, 2048, 1024, 512, 256, _LANE):
        if n % c == 0:
            return c
    return _LANE


def _sublane_multiple(itemsize):
    # Sub-32-bit dtypes pack along sublanes: 8 rows (f32), 16 (bf16), 32 (int8).
    return {4: 8, 2: 16, 1: 32}.get(itemsize, 8)


def noise_forward(x, *, std: float, seed: int, training: bool = True,
                  donate_x: bool = False, interpret: bool = False):
    """Pallas equivalent of rajo `Noise.forward`.

    Set donate_x=True only when the caller does not reuse `x` afterwards
    (aliases x's HBM buffer into the output).
    """
    if not training:
        return x

    orig_shape = x.shape
    orig_dtype = x.dtype
    n = x.size
    if n == 0:
        return x

    flat = x.reshape(-1)

    # Ragged tail (n not a multiple of 128, rare): handle the <128-element tail
    # in plain JAX so the kernel path never needs a full-tensor pad/slice.
    rem = n % _LANE
    tail_out = None
    if rem:
        tail = flat[n - rem:]
        tkey = jax.random.fold_in(jax.random.PRNGKey(seed), 0x7A11)
        tnoise = jax.random.normal(tkey, tail.shape, dtype=jnp.float32)
        tail_out = (tail.astype(jnp.float32) + jnp.float32(std) * tnoise).astype(orig_dtype)
        flat = flat[: n - rem]
        n = n - rem
        if n == 0:
            return tail_out.reshape(orig_shape)

    cols = _choose_cols(n)
    rows = n // cols                       # exact: no padding copy ever
    x2d = flat.reshape(rows, cols)

    itemsize = jnp.dtype(orig_dtype).itemsize
    sub = _sublane_multiple(itemsize)
    total_bytes = n * itemsize

    # Byte-based, dtype-aware block sizing: ~2 MiB per tile regardless of dtype.
    block_rows = min(rows, max(sub, _TARGET_BLOCK_BYTES // (cols * itemsize)))
    # v7x has 2 TensorCores sharing HBM: ensure >=2 programs for mid/large tensors.
    if total_bytes >= _SPLIT_THRESHOLD_BYTES:
        block_rows = min(block_rows, max(sub, pl.cdiv(rows, 2)))
    if block_rows < rows:
        block_rows = max(sub, (block_rows // sub) * sub)
    grid = (pl.cdiv(rows, block_rows),)

    seed_arr = jnp.asarray([seed], dtype=jnp.int32)
    use_tpu_prng = (jax.default_backend() == "tpu") and not interpret

    out2d = pl.pallas_call(
        functools.partial(_noise_kernel, std=float(std), use_tpu_prng=use_tpu_prng),
        out_shape=jax.ShapeDtypeStruct((rows, cols), orig_dtype),
        grid=grid,
        in_specs=[
            pl.BlockSpec(memory_space=pltpu.MemorySpace.SMEM),    # seed scalar
            pl.BlockSpec((block_rows, cols), lambda i: (i, 0)),   # x tile
        ],
        out_specs=pl.BlockSpec((block_rows, cols), lambda i: (i, 0)),
        compiler_params=pltpu.CompilerParams(
            dimension_semantics=("parallel",),   # per-block independent noise
        ),
        cost_estimate=pl.CostEstimate(
            flops=2 * n,
            transcendentals=2 * n,
            bytes_accessed=2 * n * itemsize,
        ),
        input_output_aliases=({1: 0} if donate_x else {}),
        interpret=interpret,
    )(seed_arr, x2d)

    out_flat = out2d.reshape(-1)
    if tail_out is not None:
        out_flat = jnp.concatenate([out_flat, tail_out])
    return out_flat.reshape(orig_shape)


if __name__ == "__main__":
    key = jax.random.PRNGKey(0)
    x = jax.random.normal(key, (2, 4, 16, 16), dtype=jnp.float32)  # NCHW

    std = 0.5
    y = noise_forward(x, std=std, seed=1234, training=True)
    y = jax.block_until_ready(y)

    assert y.shape == x.shape and y.dtype == x.dtype

    # Sanity: noise = y - x should have ~zero mean and std ~= 0.5.
    noise = y - x
    m = float(jnp.mean(noise))
    s = float(jnp.std(noise))
    assert abs(m) < 0.15, f"noise mean too large: {m}"
    assert 0.3 < s < 0.7, f"noise std off: {s}"

    # Eval mode is identity.
    y_eval = noise_forward(x, std=std, seed=1234, training=False)
    assert bool(jnp.all(y_eval == x))

    # Ragged-size path (n % 128 != 0): kernel on the 128-multiple prefix plus a
    # plain-JAX tail, with no full-tensor pad/slice.
    x2 = jax.random.normal(jax.random.PRNGKey(0), (5, 100), dtype=jnp.float32)
    y2 = jax.block_until_ready(noise_forward(x2, std=std, seed=7, training=True))
    assert y2.shape == x2.shape and y2.dtype == x2.dtype
    n2 = y2 - x2
    assert abs(float(jnp.mean(n2))) < 0.2
    assert 0.3 < float(jnp.std(n2)) < 0.7

    print("KERNEL_OK")
</pallas_src>

<mosaic_0001>
module attributes {stable_mosaic.version = 11 : i64} {
  func.func @_noise_kernel(%arg0: i32, %arg1: memref<1xi32, #tpu.memory_space<smem>>, %arg2: memref<1x2048xf32, #tpu.memory_space<vmem>>, %arg3: memref<1x2048xf32, #tpu.memory_space<vmem>>) attributes {dimension_semantics = [#tpu.dimension_semantics<parallel>], iteration_bounds = array<i64: 1>, scalar_prefetch = 0 : i64, scratch_operands = 0 : i64, tpu.core_type = #tpu.core_type<tc>, window_params = [{transform_indices = @transform_0, window_bounds = array<i64: 1>}, {transform_indices = @transform_1, window_bounds = array<i64: 1, 2048>}, {transform_indices = @transform_2, window_bounds = array<i64: 1, 2048>}]} {
    %c0 = arith.constant 0 : index
    %0 = memref.load %arg1[%c0] : memref<1xi32, #tpu.memory_space<smem>>
    %1 = tpu.iota {dimensions = array<i32: 0>} : vector<1x2048xi32>
    %2 = tpu.iota {dimensions = array<i32: 1>} : vector<1x2048xi32>
    %c2048_i32 = arith.constant 2048 : i32
    %3 = arith.muli %arg0, %c2048_i32 : i32
    %c2048_i32_0 = arith.constant 2048 : i32
    %4 = vector.broadcast %c2048_i32_0 : i32 to vector<1x2048xi32>
    %5 = arith.muli %1, %4 : vector<1x2048xi32>
    %6 = vector.broadcast %3 : i32 to vector<1x2048xi32>
    %7 = arith.addi %6, %5 : vector<1x2048xi32>
    %8 = arith.addi %7, %2 : vector<1x2048xi32>
    %c-1640531527_i32 = arith.constant -1640531527 : i32
    %9 = arith.muli %0, %c-1640531527_i32 : i32
    %10 = vector.broadcast %9 : i32 to vector<1x2048xi32>
    %11 = arith.addi %8, %10 : vector<1x2048xi32>
    %c16_i32 = arith.constant 16 : i32
    %12 = vector.broadcast %c16_i32 : i32 to vector<1x2048xi32>
    %13 = arith.shrui %11, %12 : vector<1x2048xi32>
    %14 = arith.xori %11, %13 : vector<1x2048xi32>
    %c2146121005_i32 = arith.constant 2146121005 : i32
    %15 = vector.broadcast %c2146121005_i32 : i32 to vector<1x2048xi32>
    %16 = arith.muli %14, %15 : vector<1x2048xi32>
    %c15_i32 = arith.constant 15 : i32
    %17 = vector.broadcast %c15_i32 : i32 to vector<1x2048xi32>
    %18 = arith.shrui %16, %17 : vector<1x2048xi32>
    %19 = arith.xori %16, %18 : vector<1x2048xi32>
    %c-2073254261_i32 = arith.constant -2073254261 : i32
    %20 = vector.broadcast %c-2073254261_i32 : i32 to vector<1x2048xi32>
    %21 = arith.muli %19, %20 : vector<1x2048xi32>
    %c16_i32_1 = arith.constant 16 : i32
    %22 = vector.broadcast %c16_i32_1 : i32 to vector<1x2048xi32>
    %23 = arith.shrui %21, %22 : vector<1x2048xi32>
    %24 = arith.xori %21, %23 : vector<1x2048xi32>
    %c-2048144789_i32 = arith.constant -2048144789 : i32
    %25 = vector.broadcast %c-2048144789_i32 : i32 to vector<1x2048xi32>
    %26 = arith.xori %24, %25 : vector<1x2048xi32>
    %c16_i32_2 = arith.constant 16 : i32
    %27 = vector.broadcast %c16_i32_2 : i32 to vector<1x2048xi32>
    %28 = arith.shrui %26, %27 : vector<1x2048xi32>
    %29 = arith.xori %26, %28 : vector<1x2048xi32>
    %c2146121005_i32_3 = arith.constant 2146121005 : i32
    %30 = vector.broadcast %c2146121005_i32_3 : i32 to vector<1x2048xi32>
    %31 = arith.muli %29, %30 : vector<1x2048xi32>
    %c15_i32_4 = arith.constant 15 : i32
    %32 = vector.broadcast %c15_i32_4 : i32 to vector<1x2048xi32>
    %33 = arith.shrui %31, %32 : vector<1x2048xi32>
    %34 = arith.xori %31, %33 : vector<1x2048xi32>
    %c-2073254261_i32_5 = arith.constant -2073254261 : i32
    %35 = vector.broadcast %c-2073254261_i32_5 : i32 to vector<1x2048xi32>
    %36 = arith.muli %34, %35 : vector<1x2048xi32>
    %c16_i32_6 = arith.constant 16 : i32
    %37 = vector.broadcast %c16_i32_6 : i32 to vector<1x2048xi32>
    %38 = arith.shrui %36, %37 : vector<1x2048xi32>
    %39 = arith.xori %36, %38 : vector<1x2048xi32>
    %c8_i32 = arith.constant 8 : i32
    %40 = vector.broadcast %c8_i32 : i32 to vector<1x2048xi32>
    %41 = arith.shrui %24, %40 : vector<1x2048xi32>
    %42 = arith.uitofp %41 : vector<1x2048xi32> to vector<1x2048xf32>
    %cst = arith.constant 1.000000e+00 : f32
    %43 = vector.broadcast %cst : f32 to vector<1x2048xf32>
    %44 = arith.addf %42, %43 : vector<1x2048xf32>
    %cst_7 = arith.constant 5.96046448E-8 : f32
    %45 = vector.broadcast %cst_7 : f32 to vector<1x2048xf32>
    %46 = arith.mulf %44, %45 : vector<1x2048xf32>
    %c8_i32_8 = arith.constant 8 : i32
    %47 = vector.broadcast %c8_i32_8 : i32 to vector<1x2048xi32>
    %48 = arith.shrui %39, %47 : vector<1x2048xi32>
    %49 = arith.uitofp %48 : vector<1x2048xi32> to vector<1x2048xf32>
    %cst_9 = arith.constant 5.96046448E-8 : f32
    %50 = vector.broadcast %cst_9 : f32 to vector<1x2048xf32>
    %51 = arith.mulf %49, %50 : vector<1x2048xf32>
    %52 = math.log %46 : vector<1x2048xf32>
    %cst_10 = arith.constant -2.000000e+00 : f32
    %53 = vector.broadcast %cst_10 : f32 to vector<1x2048xf32>
    %54 = arith.mulf %53, %52 : vector<1x2048xf32>
    %55 = math.sqrt %54 : vector<1x2048xf32>
    %cst_11 = arith.constant 6.28318548 : f32
    %56 = vector.broadcast %cst_11 : f32 to vector<1x2048xf32>
    %57 = arith.mulf %56, %51 : vector<1x2048xf32>
    %58 = math.cos %57 : vector<1x2048xf32>
    %59 = arith.mulf %55, %58 : vector<1x2048xf32>
    %c0_12 = arith.constant 0 : index
    %c0_13 = arith.constant 0 : index
    %60 = vector.load %arg2[%c0_12, %c0_13] : memref<1x2048xf32, #tpu.memory_space<vmem>>, vector<1x2048xf32>
    %cst_14 = arith.constant 5.000000e-01 : f32
    %61 = vector.broadcast %cst_14 : f32 to vector<1x2048xf32>
    %62 = arith.mulf %61, %59 : vector<1x2048xf32>
    %63 = arith.addf %60, %62 : vector<1x2048xf32>
    %c0_15 = arith.constant 0 : index
    %c0_16 = arith.constant 0 : index
    %64 = vector.load %arg3[%c0_15, %c0_16] : memref<1x2048xf32, #tpu.memory_space<vmem>>, vector<1x2048xf32>
    tpu.vector_store %arg3[%c0_15, %c0_16], %63 {strides = array<i32>} : memref<1x2048xf32, #tpu.memory_space<vmem>>, vector<1x2048xf32>,
    return
  }
  func.func @transform_0(%arg0: i32) -> i32 {
    %c0_i32 = arith.constant 0 : i32
    %c0_i32_0 = arith.constant 0 : i32
    return %c0_i32 : i32
  }
  func.func @transform_1(%arg0: i32) -> (i32, i32) {
    %c0_i32 = arith.constant 0 : i32
    %c0_i32_0 = arith.constant 0 : i32
    return %arg0, %c0_i32 : i32, i32
  }
  func.func @transform_2(%arg0: i32) -> (i32, i32) {
    %c0_i32 = arith.constant 0 : i32
    %c0_i32_0 = arith.constant 0 : i32
    return %arg0, %c0_i32 : i32, i32
  }
}

</mosaic_0001>

<llo_original>
// kernel: tpu_custom_call.1
$region0: #{tpu_custom_call.1}
  #allocation0 [shape = 'u32[]', space=smem, size = 0x4, offset = 0x4, fixed_abs, tag = 'smem constant byte address 0x4 - core index']
  #allocation1 [shape = 'u32[144,128]{1,0:T(1,128)}', space=vmem, size = 0x12000, scoped, tag = 'internal scratch']
  #allocation2 [shape = 's32[1]{0:T(128)S(6)}', space=smem, size = 0x200, scoped, tag = 'scoped memory for tpu_custom_call.1']
  %s0 = inlined_call_operand.<no memory space> [shape: s32[1], index: 0, kind: input, shape index: {}]
  %s1 = inlined_call_operand.hbm [shape: f32[1,2048], index: 1, kind: input, shape index: {}]
  %s2 = inlined_call_operand.hbm [shape: f32[1,2048], index: 2, kind: output, shape index: {}]
  %s3 = sld [smem:[#allocation0]]
  $region22: #{tpu_custom_call.1} parent=0
    _
  %s5 = ssub.s32 1, %s3
  %s6 = scalar_select 0, %s5, %s3
  %7 = sst [smem:[#allocation2]] %s0
  $region1: #{tpu_custom_call.1} parent=0
    #allocation3 [shape = 'u8[8192]{0}', space=vmem, size = 0x2000, scoped, tag = 'input window, operand 1, single buffered']
    #allocation4 [shape = 's32[1]{0}', space=sflag, size = 0x4, scoped, tag = 'scoped memory for tpu_custom_call.1']
    #allocation5 [shape = 's32[1]{0}', space=sflag, size = 0x4, scoped, tag = 'scoped memory for tpu_custom_call.1']
    #allocation6 [shape = 'u8[8192]{0}', space=vmem, size = 0x2000, scoped, tag = 'output window, operand 0, single buffered']
    %8 = vsyncpa [#allocation4], 0
    %9 = vsyncpa [#allocation5], 0
    // Predicated region
    $region2: #{tpu_custom_call.1} parent=1 // pred_check
      _
    $region3: #{tpu_custom_call.1} parent=1 // pred_check_branch
      %11 = sbr.rel (0) target = $region5
    $region4: #{tpu_custom_call.1} parent=1 // pred_region
      _
    $region5: #{tpu_custom_call.1} parent=1 // pred_fallthru
      _
    // Predicated region
    $region6: #{tpu_custom_call.1} parent=1 // pred_check
      _
    $region7: #{tpu_custom_call.1} parent=1 // pred_check_branch
      %13 = sbr.rel (0) target = $region9
    $region8: #{tpu_custom_call.1} parent=1 // pred_region
      %s15 = ssub.s32 256, 256
      %16 = vsyncadd [#allocation4], %s15
      %s18 = sshll.u32 [#allocation3], 4
      %s19 = int_to_ptr.vmem [resolvable:$true] %s18
      %21 = dma.hbm_to_vmem [thread:$0]  %s1, 256, %s19, [#allocation4]
    $region9: #{tpu_custom_call.1} parent=1 // pred_fallthru
      _
    // Predicated region
    $region10: #{tpu_custom_call.1} parent=1 // pred_check
      _
    $region11: #{tpu_custom_call.1} parent=1 // pred_check_branch
      %23 = sbr.rel (0) target = $region13
    $region12: #{tpu_custom_call.1} parent=1 // pred_region
      %24 = dma.done [#allocation4], 256
    $region13: #{tpu_custom_call.1} parent=1 // pred_fallthru
      _
    %s25 = sld [smem:[#allocation2]]
    %v26 = vlaneseq
    %v27 = vshrl.u32 %v26, 7
    %v28 = vlaneseq
    %v29 = vand.u32 %v28, 127
    %v30 = vadd.s32 %v29, 128
    %v31 = vadd.s32 %v29, 256
    %v32 = vadd.s32 %v29, 384
    %v33 = vadd.s32 %v29, 512
    %v34 = vadd.s32 %v29, 640
    %v35 = vadd.s32 %v29, 768
    %v36 = vadd.s32 %v29, 896
    %v37 = vadd.s32 %v29, 1024
    %v38 = vadd.s32 %v29, 1152
    %v39 = vadd.s32 %v29, 1280
    %v40 = vadd.s32 %v29, 1408
    %v41 = vadd.s32 %v29, 1536
    %v42 = vadd.s32 %v29, 1664
    %v43 = vadd.s32 %v29, 1792
    %v44 = vadd.s32 %v29, 1920
    %s45 = smul.u32 0, 2048
    %v46 = vmul.u32 %v27, 2048
    %v47 = vstv %s45
    %v48 = vadd.s32 %v47, %v46
    %v49 = vadd.s32 %v48, %v29
    %v50 = vadd.s32 %v48, %v30
    %v51 = vadd.s32 %v48, %v31
    %v52 = vadd.s32 %v48, %v32
    %v53 = vadd.s32 %v48, %v33
    %v54 = vadd.s32 %v48, %v34
    %v55 = vadd.s32 %v48, %v35
    %v56 = vadd.s32 %v48, %v36
    %v57 = vadd.s32 %v48, %v37
    %v58 = vadd.s32 %v48, %v38
    %v59 = vadd.s32 %v48, %v39
    %v60 = vadd.s32 %v48, %v40
    %v61 = vadd.s32 %v48, %v41
    %v62 = vadd.s32 %v48, %v42
    %v63 = vadd.s32 %v48, %v43
    %v64 = vadd.s32 %v48, %v44
    %s65 = smul.u32 %s25, 2654435769
    %v66 = vstv %s65
    %v67 = vadd.s32 %v49, %v66
    %v68 = vadd.s32 %v50, %v66
    %v69 = vadd.s32 %v51, %v66
    %v70 = vadd.s32 %v52, %v66
    %v71 = vadd.s32 %v53, %v66
    %v72 = vadd.s32 %v54, %v66
    %v73 = vadd.s32 %v55, %v66
    %v74 = vadd.s32 %v56, %v66
    %v75 = vadd.s32 %v57, %v66
    %v76 = vadd.s32 %v58, %v66
    %v77 = vadd.s32 %v59, %v66
    %v78 = vadd.s32 %v60, %v66
    %v79 = vadd.s32 %v61, %v66
    %v80 = vadd.s32 %v62, %v66
    %v81 = vadd.s32 %v63, %v66
    %v82 = vadd.s32 %v64, %v66
    %v83 = vshrl.u32 %v67, 16
    %v84 = vshrl.u32 %v68, 16
    %v85 = vshrl.u32 %v69, 16
    %v86 = vshrl.u32 %v70, 16
    %v87 = vshrl.u32 %v71, 16
    %v88 = vshrl.u32 %v72, 16
    %v89 = vshrl.u32 %v73, 16
    %v90 = vshrl.u32 %v74, 16
    %v91 = vshrl.u32 %v75, 16
    %v92 = vshrl.u32 %v76, 16
    %v93 = vshrl.u32 %v77, 16
    %v94 = vshrl.u32 %v78, 16
    %v95 = vshrl.u32 %v79, 16
    %v96 = vshrl.u32 %v80, 16
    %v97 = vshrl.u32 %v81, 16
    %v98 = vshrl.u32 %v82, 16
    %v99 = vxor.u32 %v67, %v83
    %v100 = vxor.u32 %v68, %v84
    %v101 = vxor.u32 %v69, %v85
    %v102 = vxor.u32 %v70, %v86
    %v103 = vxor.u32 %v71, %v87
    %v104 = vxor.u32 %v72, %v88
    %v105 = vxor.u32 %v73, %v89
    %v106 = vxor.u32 %v74, %v90
    %v107 = vxor.u32 %v75, %v91
    %v108 = vxor.u32 %v76, %v92
    %v109 = vxor.u32 %v77, %v93
    %v110 = vxor.u32 %v78, %v94
    %v111 = vxor.u32 %v79, %v95
    %v112 = vxor.u32 %v80, %v96
    %v113 = vxor.u32 %v81, %v97
    %v114 = vxor.u32 %v82, %v98
    %v115 = vmul.u32 %v99, 2146121005
    %v116 = vmul.u32 %v100, 2146121005
    %v117 = vmul.u32 %v101, 2146121005
    %v118 = vmul.u32 %v102, 2146121005
    %v119 = vmul.u32 %v103, 2146121005
    %v120 = vmul.u32 %v104, 2146121005
    %v121 = vmul.u32 %v105, 2146121005
    %v122 = vmul.u32 %v106, 2146121005
    %v123 = vmul.u32 %v107, 2146121005
    %v124 = vmul.u32 %v108, 2146121005
    %v125 = vmul.u32 %v109, 2146121005
    %v126 = vmul.u32 %v110, 2146121005
    %v127 = vmul.u32 %v111, 2146121005
    %v128 = vmul.u32 %v112, 2146121005
    %v129 = vmul.u32 %v113, 2146121005
    %v130 = vmul.u32 %v114, 2146121005
    %v131 = vshrl.u32 %v115, 15
    %v132 = vshrl.u32 %v116, 15
    %v133 = vshrl.u32 %v117, 15
    %v134 = vshrl.u32 %v118, 15
    %v135 = vshrl.u32 %v119, 15
    %v136 = vshrl.u32 %v120, 15
    %v137 = vshrl.u32 %v121, 15
    %v138 = vshrl.u32 %v122, 15
    %v139 = vshrl.u32 %v123, 15
    %v140 = vshrl.u32 %v124, 15
    %v141 = vshrl.u32 %v125, 15
    %v142 = vshrl.u32 %v126, 15
    %v143 = vshrl.u32 %v127, 15
    %v144 = vshrl.u32 %v128, 15
    %v145 = vshrl.u32 %v129, 15
    %v146 = vshrl.u32 %v130, 15
    %v147 = vxor.u32 %v115, %v131
    %v148 = vxor.u32 %v116, %v132
    %v149 = vxor.u32 %v117, %v133
    %v150 = vxor.u32 %v118, %v134
    %v151 = vxor.u32 %v119, %v135
    %v152 = vxor.u32 %v120, %v136
    %v153 = vxor.u32 %v121, %v137
    %v154 = vxor.u32 %v122, %v138
    %v155 = vxor.u32 %v123, %v139
    %v156 = vxor.u32 %v124, %v140
    %v157 = vxor.u32 %v125, %v141
    %v158 = vxor.u32 %v126, %v142
    %v159 = vxor.u32 %v127, %v143
    %v160 = vxor.u32 %v128, %v144
    %v161 = vxor.u32 %v129, %v145
    %v162 = vxor.u32 %v130, %v146
    %v163 = vmul.u32 %v147, 2221713035
    %v164 = vmul.u32 %v148, 2221713035
    %v165 = vmul.u32 %v149, 2221713035
    %v166 = vmul.u32 %v150, 2221713035
    %v167 = vmul.u32 %v151, 2221713035
    %v168 = vmul.u32 %v152, 2221713035
    %v169 = vmul.u32 %v153, 2221713035
    %v170 = vmul.u32 %v154, 2221713035
    %v171 = vmul.u32 %v155, 2221713035
    %v172 = vmul.u32 %v156, 2221713035
    %v173 = vmul.u32 %v157, 2221713035
    %v174 = vmul.u32 %v158, 2221713035
    %v175 = vmul.u32 %v159, 2221713035
    %v176 = vmul.u32 %v160, 2221713035
    %v177 = vmul.u32 %v161, 2221713035
    %v178 = vmul.u32 %v162, 2221713035
    %v179 = vshrl.u32 %v163, 16
    %v180 = vshrl.u32 %v164, 16
    %v181 = vshrl.u32 %v165, 16
    %v182 = vshrl.u32 %v166, 16
    %v183 = vshrl.u32 %v167, 16
    %v184 = vshrl.u32 %v168, 16
    %v185 = vshrl.u32 %v169, 16
    %v186 = vshrl.u32 %v170, 16
    %v187 = vshrl.u32 %v171, 16
    %v188 = vshrl.u32 %v172, 16
    %v189 = vshrl.u32 %v173, 16
    %v190 = vshrl.u32 %v174, 16
    %v191 = vshrl.u32 %v175, 16
    %v192 = vshrl.u32 %v176, 16
    %v193 = vshrl.u32 %v177, 16
    %v194 = vshrl.u32 %v178, 16
    %v195 = vxor.u32 %v163, %v179
    %v196 = vxor.u32 %v164, %v180
    %v197 = vxor.u32 %v165, %v181
    %v198 = vxor.u32 %v166, %v182
    %v199 = vxor.u32 %v167, %v183
    %v200 = vxor.u32 %v168, %v184
    %v201 = vxor.u32 %v169, %v185
    %v202 = vxor.u32 %v170, %v186
    %v203 = vxor.u32 %v171, %v187
    %v204 = vxor.u32 %v172, %v188
    %v205 = vxor.u32 %v173, %v189
    %v206 = vxor.u32 %v174, %v190
    %v207 = vxor.u32 %v175, %v191
    %v208 = vxor.u32 %v176, %v192
    %v209 = vxor.u32 %v177, %v193
    %v210 = vxor.u32 %v178, %v194
    %v211 = vxor.u32 %v195, 2246822507
    %v212 = vxor.u32 %v196, 2246822507
    %v213 = vxor.u32 %v197, 2246822507
    %v214 = vxor.u32 %v198, 2246822507
    %v215 = vxor.u32 %v199, 2246822507
    %v216 = vxor.u32 %v200, 2246822507
    %v217 = vxor.u32 %v201, 2246822507
    %v218 = vxor.u32 %v202, 2246822507
    %v219 = vxor.u32 %v203, 2246822507
    %v220 = vxor.u32 %v204, 2246822507
    %v221 = vxor.u32 %v205, 2246822507
    %v222 = vxor.u32 %v206, 2246822507
    %v223 = vxor.u32 %v207, 2246822507
    %v224 = vxor.u32 %v208, 2246822507
    %v225 = vxor.u32 %v209, 2246822507
    %v226 = vxor.u32 %v210, 2246822507
    %v227 = vshrl.u32 %v211, 16
    %v228 = vshrl.u32 %v212, 16
    %v229 = vshrl.u32 %v213, 16
    %v230 = vshrl.u32 %v214, 16
    %v231 = vshrl.u32 %v215, 16
    %v232 = vshrl.u32 %v216, 16
    %v233 = vshrl.u32 %v217, 16
    %v234 = vshrl.u32 %v218, 16
    %v235 = vshrl.u32 %v219, 16
    %v236 = vshrl.u32 %v220, 16
    %v237 = vshrl.u32 %v221, 16
    %v238 = vshrl.u32 %v222, 16
    %v239 = vshrl.u32 %v223, 16
    %v240 = vshrl.u32 %v224, 16
    %v241 = vshrl.u32 %v225, 16
    %v242 = vshrl.u32 %v226, 16
    %v243 = vxor.u32 %v211, %v227
    %v244 = vxor.u32 %v212, %v228
    %v245 = vxor.u32 %v213, %v229
    %v246 = vxor.u32 %v214, %v230
    %v247 = vxor.u32 %v215, %v231
    %v248 = vxor.u32 %v216, %v232
    %v249 = vxor.u32 %v217, %v233
    %v250 = vxor.u32 %v218, %v234
    %v251 = vxor.u32 %v219, %v235
    %v252 = vxor.u32 %v220, %v236
    %v253 = vxor.u32 %v221, %v237
    %v254 = vxor.u32 %v222, %v238
    %v255 = vxor.u32 %v223, %v239
    %v256 = vxor.u32 %v224, %v240
    %v257 = vxor.u32 %v225, %v241
    %v258 = vxor.u32 %v226, %v242
    %v259 = vmul.u32 %v243, 2146121005
    %v260 = vmul.u32 %v244, 2146121005
    %v261 = vmul.u32 %v245, 2146121005
    %v262 = vmul.u32 %v246, 2146121005
    %v263 = vmul.u32 %v247, 2146121005
    %v264 = vmul.u32 %v248, 2146121005
    %v265 = vmul.u32 %v249, 2146121005
    %v266 = vmul.u32 %v250, 2146121005
    %v267 = vmul.u32 %v251, 2146121005
    %v268 = vmul.u32 %v252, 2146121005
    %v269 = vmul.u32 %v253, 2146121005
    %v270 = vmul.u32 %v254, 2146121005
    %v271 = vmul.u32 %v255, 2146121005
    %v272 = vmul.u32 %v256, 2146121005
    %v273 = vmul.u32 %v257, 2146121005
    %v274 = vmul.u32 %v258, 2146121005
    %v275 = vshrl.u32 %v259, 15
    %v276 = vshrl.u32 %v260, 15
    %v277 = vshrl.u32 %v261, 15
    %v278 = vshrl.u32 %v262, 15
    %v279 = vshrl.u32 %v263, 15
    %v280 = vshrl.u32 %v264, 15
    %v281 = vshrl.u32 %v265, 15
    %v282 = vshrl.u32 %v266, 15
    %v283 = vshrl.u32 %v267, 15
    %v284 = vshrl.u32 %v268, 15
    %v285 = vshrl.u32 %v269, 15
    %v286 = vshrl.u32 %v270, 15
    %v287 = vshrl.u32 %v271, 15
    %v288 = vshrl.u32 %v272, 15
    %v289 = vshrl.u32 %v273, 15
    %v290 = vshrl.u32 %v274, 15
    %v291 = vxor.u32 %v259, %v275
    %v292 = vxor.u32 %v260, %v276
    %v293 = vxor.u32 %v261, %v277
    %v294 = vxor.u32 %v262, %v278
    %v295 = vxor.u32 %v263, %v279
    %v296 = vxor.u32 %v264, %v280
    %v297 = vxor.u32 %v265, %v281
    %v298 = vxor.u32 %v266, %v282
    %v299 = vxor.u32 %v267, %v283
    %v300 = vxor.u32 %v268, %v284
    %v301 = vxor.u32 %v269, %v285
    %v302 = vxor.u32 %v270, %v286
    %v303 = vxor.u32 %v271, %v287
    %v304 = vxor.u32 %v272, %v288
    %v305 = vxor.u32 %v273, %v289
    %v306 = vxor.u32 %v274, %v290
    %v307 = vmul.u32 %v291, 2221713035
    %v308 = vmul.u32 %v292, 2221713035
    %v309 = vmul.u32 %v293, 2221713035
    %v310 = vmul.u32 %v294, 2221713035
    %v311 = vmul.u32 %v295, 2221713035
    %v312 = vmul.u32 %v296, 2221713035
    %v313 = vmul.u32 %v297, 2221713035
    %v314 = vmul.u32 %v298, 2221713035
    %v315 = vmul.u32 %v299, 2221713035
    %v316 = vmul.u32 %v300, 2221713035
    %v317 = vmul.u32 %v301, 2221713035
    %v318 = vmul.u32 %v302, 2221713035
    %v319 = vmul.u32 %v303, 2221713035
    %v320 = vmul.u32 %v304, 2221713035
    %v321 = vmul.u32 %v305, 2221713035
    %v322 = vmul.u32 %v306, 2221713035
    %v323 = vshrl.u32 %v307, 16
    %v324 = vshrl.u32 %v308, 16
    %v325 = vshrl.u32 %v309, 16
    %v326 = vshrl.u32 %v310, 16
    %v327 = vshrl.u32 %v311, 16
    %v328 = vshrl.u32 %v312, 16
    %v329 = vshrl.u32 %v313, 16
    %v330 = vshrl.u32 %v314, 16
    %v331 = vshrl.u32 %v315, 16
    %v332 = vshrl.u32 %v316, 16
    %v333 = vshrl.u32 %v317, 16
    %v334 = vshrl.u32 %v318, 16
    %v335 = vshrl.u32 %v319, 16
    %v336 = vshrl.u32 %v320, 16
    %v337 = vshrl.u32 %v321, 16
    %v338 = vshrl.u32 %v322, 16
    %v339 = vxor.u32 %v307, %v323
    %v340 = vxor.u32 %v308, %v324
    %v341 = vxor.u32 %v309, %v325
    %v342 = vxor.u32 %v310, %v326
    %v343 = vxor.u32 %v311, %v327
    %v344 = vxor.u32 %v312, %v328
    %v345 = vxor.u32 %v313, %v329
    %v346 = vxor.u32 %v314, %v330
    %v347 = vxor.u32 %v315, %v331
    %v348 = vxor.u32 %v316, %v332
    %v349 = vxor.u32 %v317, %v333
    %v350 = vxor.u32 %v318, %v334
    %v351 = vxor.u32 %v319, %v335
    %v352 = vxor.u32 %v320, %v336
    %v353 = vxor.u32 %v321, %v337
    %v354 = vxor.u32 %v322, %v338
    %v355 = vshrl.u32 %v195, 8
    %v356 = vshrl.u32 %v196, 8
    %v357 = vshrl.u32 %v197, 8
    %v358 = vshrl.u32 %v198, 8
    %v359 = vshrl.u32 %v199, 8
    %v360 = vshrl.u32 %v200, 8
    %v361 = vshrl.u32 %v201, 8
    %v362 = vshrl.u32 %v202, 8
    %v363 = vshrl.u32 %v203, 8
    %v364 = vshrl.u32 %v204, 8
    %v365 = vshrl.u32 %v205, 8
    %v366 = vshrl.u32 %v206, 8
    %v367 = vshrl.u32 %v207, 8
    %v368 = vshrl.u32 %v208, 8
    %v369 = vshrl.u32 %v209, 8
    %v370 = vshrl.u32 %v210, 8
    %v371 = vshrl.u32 %v355, 16
    %v372 = vand.u32 %v355, 65535
    %v373 = vcvt.s32.f32 %v371
    %v374 = vmul.f32 %v373, 65536.0
    %v375 = vcvt.s32.f32 %v372
    %v376 = vadd.f32 %v374, %v375
    %v377 = vshrl.u32 %v356, 16
    %v378 = vand.u32 %v356, 65535
    %v379 = vcvt.s32.f32 %v377
    %v380 = vmul.f32 %v379, 65536.0
    %v381 = vcvt.s32.f32 %v378
    %v382 = vadd.f32 %v380, %v381
    %v383 = vshrl.u32 %v357, 16
    %v384 = vand.u32 %v357, 65535
    %v385 = vcvt.s32.f32 %v383
    %v386 = vmul.f32 %v385, 65536.0
    %v387 = vcvt.s32.f32 %v384
    %v388 = vadd.f32 %v386, %v387
    %v389 = vshrl.u32 %v358, 16
    %v390 = vand.u32 %v358, 65535
    %v391 = vcvt.s32.f32 %v389
    %v392 = vmul.f32 %v391, 65536.0
    %v393 = vcvt.s32.f32 %v390
    %v394 = vadd.f32 %v392, %v393
    %v395 = vshrl.u32 %v359, 16
    %v396 = vand.u32 %v359, 65535
    %v397 = vcvt.s32.f32 %v395
    %v398 = vmul.f32 %v397, 65536.0
    %v399 = vcvt.s32.f32 %v396
    %v400 = vadd.f32 %v398, %v399
    %v401 = vshrl.u32 %v360, 16
    %v402 = vand.u32 %v360, 65535
    %v403 = vcvt.s32.f32 %v401
    %v404 = vmul.f32 %v403, 65536.0
    %v405 = vcvt.s32.f32 %v402
    %v406 = vadd.f32 %v404, %v405
    %v407 = vshrl.u32 %v361, 16
    %v408 = vand.u32 %v361, 65535
    %v409 = vcvt.s32.f32 %v407
    %v410 = vmul.f32 %v409, 65536.0
    %v411 = vcvt.s32.f32 %v408
    %v412 = vadd.f32 %v410, %v411
    %v413 = vshrl.u32 %v362, 16
    %v414 = vand.u32 %v362, 65535
    %v415 = vcvt.s32.f32 %v413
    %v416 = vmul.f32 %v415, 65536.0
    %v417 = vcvt.s32.f32 %v414
    %v418 = vadd.f32 %v416, %v417
    %v419 = vshrl.u32 %v363, 16
    %v420 = vand.u32 %v363, 65535
    %v421 = vcvt.s32.f32 %v419
    %v422 = vmul.f32 %v421, 65536.0
    %v423 = vcvt.s32.f32 %v420
    %v424 = vadd.f32 %v422, %v423
    %v425 = vshrl.u32 %v364, 16
    %v426 = vand.u32 %v364, 65535
    %v427 = vcvt.s32.f32 %v425
    %v428 = vmul.f32 %v427, 65536.0
    %v429 = vcvt.s32.f32 %v426
    %v430 = vadd.f32 %v428, %v429
    %v431 = vshrl.u32 %v365, 16
    %v432 = vand.u32 %v365, 65535
    %v433 = vcvt.s32.f32 %v431
    %v434 = vmul.f32 %v433, 65536.0
    %v435 = vcvt.s32.f32 %v432
    %v436 = vadd.f32 %v434, %v435
    %v437 = vshrl.u32 %v366, 16
    %v438 = vand.u32 %v366, 65535
    %v439 = vcvt.s32.f32 %v437
    %v440 = vmul.f32 %v439, 65536.0
    %v441 = vcvt.s32.f32 %v438
    %v442 = vadd.f32 %v440, %v441
    %v443 = vshrl.u32 %v367, 16
    %v444 = vand.u32 %v367, 65535
    %v445 = vcvt.s32.f32 %v443
    %v446 = vmul.f32 %v445, 65536.0
    %v447 = vcvt.s32.f32 %v444
    %v448 = vadd.f32 %v446, %v447
    %v449 = vshrl.u32 %v368, 16
    %v450 = vand.u32 %v368, 65535
    %v451 = vcvt.s32.f32 %v449
    %v452 = vmul.f32 %v451, 65536.0
    %v453 = vcvt.s32.f32 %v450
    %v454 = vadd.f32 %v452, %v453
    %v455 = vshrl.u32 %v369, 16
    %v456 = vand.u32 %v369, 65535
    %v457 = vcvt.s32.f32 %v455
    %v458 = vmul.f32 %v457, 65536.0
    %v459 = vcvt.s32.f32 %v456
    %v460 = vadd.f32 %v458, %v459
    %v461 = vshrl.u32 %v370, 16
    %v462 = vand.u32 %v370, 65535
    %v463 = vcvt.s32.f32 %v461
    %v464 = vmul.f32 %v463, 65536.0
    %v465 = vcvt.s32.f32 %v462
    %v466 = vadd.f32 %v464, %v465
    %v467 = vadd.f32 %v376, 1.0
    %v468 = vadd.f32 %v382, 1.0
    %v469 = vadd.f32 %v388, 1.0
    %v470 = vadd.f32 %v394, 1.0
    %v471 = vadd.f32 %v400, 1.0
    %v472 = vadd.f32 %v406, 1.0
    %v473 = vadd.f32 %v412, 1.0
    %v474 = vadd.f32 %v418, 1.0
    %v475 = vadd.f32 %v424, 1.0
    %v476 = vadd.f32 %v430, 1.0
    %v477 = vadd.f32 %v436, 1.0
    %v478 = vadd.f32 %v442, 1.0
    %v479 = vadd.f32 %v448, 1.0
    %v480 = vadd.f32 %v454, 1.0
    %v481 = vadd.f32 %v460, 1.0
    %v482 = vadd.f32 %v466, 1.0
    %v483 = vmul.f32 %v467, 5.9604645e-08
    %v484 = vmul.f32 %v468, 5.9604645e-08
    %v485 = vmul.f32 %v469, 5.9604645e-08
    %v486 = vmul.f32 %v470, 5.9604645e-08
    %v487 = vmul.f32 %v471, 5.9604645e-08
    %v488 = vmul.f32 %v472, 5.9604645e-08
    %v489 = vmul.f32 %v473, 5.9604645e-08
    %v490 = vmul.f32 %v474, 5.9604645e-08
    %v491 = vmul.f32 %v475, 5.9604645e-08
    %v492 = vmul.f32 %v476, 5.9604645e-08
    %v493 = vmul.f32 %v477, 5.9604645e-08
    %v494 = vmul.f32 %v478, 5.9604645e-08
    %v495 = vmul.f32 %v479, 5.9604645e-08
    %v496 = vmul.f32 %v480, 5.9604645e-08
    %v497 = vmul.f32 %v481, 5.9604645e-08
    %v498 = vmul.f32 %v482, 5.9604645e-08
    %v499 = vshrl.u32 %v339, 8
    %v500 = vshrl.u32 %v340, 8
    %v501 = vshrl.u32 %v341, 8
    %v502 = vshrl.u32 %v342, 8
    %v503 = vshrl.u32 %v343, 8
    %v504 = vshrl.u32 %v344, 8
    %v505 = vshrl.u32 %v345, 8
    %v506 = vshrl.u32 %v346, 8
    %v507 = vshrl.u32 %v347, 8
    %v508 = vshrl.u32 %v348, 8
    %v509 = vshrl.u32 %v349, 8
    %v510 = vshrl.u32 %v350, 8
    %v511 = vshrl.u32 %v351, 8
    %v512 = vshrl.u32 %v352, 8
    %v513 = vshrl.u32 %v353, 8
    %v514 = vshrl.u32 %v354, 8
    %v515 = vshrl.u32 %v499, 16
    %v516 = vand.u32 %v499, 65535
    %v517 = vcvt.s32.f32 %v515
    %v518 = vmul.f32 %v517, 65536.0
    %v519 = vcvt.s32.f32 %v516
    %v520 = vadd.f32 %v518, %v519
    %v521 = vshrl.u32 %v500, 16
    %v522 = vand.u32 %v500, 65535
    %v523 = vcvt.s32.f32 %v521
    %v524 = vmul.f32 %v523, 65536.0
    %v525 = vcvt.s32.f32 %v522
    %v526 = vadd.f32 %v524, %v525
    %v527 = vshrl.u32 %v501, 16
    %v528 = vand.u32 %v501, 65535
    %v529 = vcvt.s32.f32 %v527
    %v530 = vmul.f32 %v529, 65536.0
    %v531 = vcvt.s32.f32 %v528
    %v532 = vadd.f32 %v530, %v531
    %v533 = vshrl.u32 %v502, 16
    %v534 = vand.u32 %v502, 65535
    %v535 = vcvt.s32.f32 %v533
    %v536 = vmul.f32 %v535, 65536.0
    %v537 = vcvt.s32.f32 %v534
    %v538 = vadd.f32 %v536, %v537
    %v539 = vshrl.u32 %v503, 16
    %v540 = vand.u32 %v503, 65535
    %v541 = vcvt.s32.f32 %v539
    %v542 = vmul.f32 %v541, 65536.0
    %v543 = vcvt.s32.f32 %v540
    %v544 = vadd.f32 %v542, %v543
    %v545 = vshrl.u32 %v504, 16
    %v546 = vand.u32 %v504, 65535
    %v547 = vcvt.s32.f32 %v545
    %v548 = vmul.f32 %v547, 65536.0
    %v549 = vcvt.s32.f32 %v546
    %v550 = vadd.f32 %v548, %v549
    %v551 = vshrl.u32 %v505, 16
    %v552 = vand.u32 %v505, 65535
    %v553 = vcvt.s32.f32 %v551
    %v554 = vmul.f32 %v553, 65536.0
    %v555 = vcvt.s32.f32 %v552
    %v556 = vadd.f32 %v554, %v555
    %v557 = vshrl.u32 %v506, 16
    %v558 = vand.u32 %v506, 65535
    %v559 = vcvt.s32.f32 %v557
    %v560 = vmul.f32 %v559, 65536.0
    %v561 = vcvt.s32.f32 %v558
    %v562 = vadd.f32 %v560, %v561
    %v563 = vshrl.u32 %v507, 16
    %v564 = vand.u32 %v507, 65535
    %v565 = vcvt.s32.f32 %v563
    %v566 = vmul.f32 %v565, 65536.0
    %v567 = vcvt.s32.f32 %v564
    %v568 = vadd.f32 %v566, %v567
    %v569 = vshrl.u32 %v508, 16
    %v570 = vand.u32 %v508, 65535
    %v571 = vcvt.s32.f32 %v569
    %v572 = vmul.f32 %v571, 65536.0
    %v573 = vcvt.s32.f32 %v570
    %v574 = vadd.f32 %v572, %v573
    %v575 = vshrl.u32 %v509, 16
    %v576 = vand.u32 %v509, 65535
    %v577 = vcvt.s32.f32 %v575
    %v578 = vmul.f32 %v577, 65536.0
    %v579 = vcvt.s32.f32 %v576
    %v580 = vadd.f32 %v578, %v579
    %v581 = vshrl.u32 %v510, 16
    %v582 = vand.u32 %v510, 65535
    %v583 = vcvt.s32.f32 %v581
    %v584 = vmul.f32 %v583, 65536.0
    %v585 = vcvt.s32.f32 %v582
    %v586 = vadd.f32 %v584, %v585
    %v587 = vshrl.u32 %v511, 16
    %v588 = vand.u32 %v511, 65535
    %v589 = vcvt.s32.f32 %v587
    %v590 = vmul.f32 %v589, 65536.0
    %v591 = vcvt.s32.f32 %v588
    %v592 = vadd.f32 %v590, %v591
    %v593 = vshrl.u32 %v512, 16
    %v594 = vand.u32 %v512, 65535
    %v595 = vcvt.s32.f32 %v593
    %v596 = vmul.f32 %v595, 65536.0
    %v597 = vcvt.s32.f32 %v594
    %v598 = vadd.f32 %v596, %v597
    %v599 = vshrl.u32 %v513, 16
    %v600 = vand.u32 %v513, 65535
    %v601 = vcvt.s32.f32 %v599
    %v602 = vmul.f32 %v601, 65536.0
    %v603 = vcvt.s32.f32 %v600
    %v604 = vadd.f32 %v602, %v603
    %v605 = vshrl.u32 %v514, 16
    %v606 = vand.u32 %v514, 65535
    %v607 = vcvt.s32.f32 %v605
    %v608 = vmul.f32 %v607, 65536.0
    %v609 = vcvt.s32.f32 %v606
    %v610 = vadd.f32 %v608, %v609
    %v611 = vmul.f32 %v520, 5.9604645e-08
    %v612 = vmul.f32 %v526, 5.9604645e-08
    %v613 = vmul.f32 %v532, 5.9604645e-08
    %v614 = vmul.f32 %v538, 5.9604645e-08
    %v615 = vmul.f32 %v544, 5.9604645e-08
    %v616 = vmul.f32 %v550, 5.9604645e-08
    %v617 = vmul.f32 %v556, 5.9604645e-08
    %v618 = vmul.f32 %v562, 5.9604645e-08
    %v619 = vmul.f32 %v568, 5.9604645e-08
    %v620 = vmul.f32 %v574, 5.9604645e-08
    %v621 = vmul.f32 %v580, 5.9604645e-08
    %v622 = vmul.f32 %v586, 5.9604645e-08
    %v623 = vmul.f32 %v592, 5.9604645e-08
    %v624 = vmul.f32 %v598, 5.9604645e-08
    %v625 = vmul.f32 %v604, 5.9604645e-08
    %v626 = vmul.f32 %v610, 5.9604645e-08
    %v627 = vlog2.pop %v483
    %v628 = vmul.f32 %v627, 0.6931472
    %v629 = vlog2.pop %v484
    %v630 = vmul.f32 %v629, 0.6931472
    %v631 = vlog2.pop %v485
    %v632 = vmul.f32 %v631, 0.6931472
    %v633 = vlog2.pop %v486
    %v634 = vmul.f32 %v633, 0.6931472
    %v635 = vlog2.pop %v487
    %v636 = vmul.f32 %v635, 0.6931472
    %v637 = vlog2.pop %v488
    %v638 = vmul.f32 %v637, 0.6931472
    %v639 = vlog2.pop %v489
    %v640 = vmul.f32 %v639, 0.6931472
    %v641 = vlog2.pop %v490
    %v642 = vmul.f32 %v641, 0.6931472
    %v643 = vlog2.pop %v491
    %v644 = vmul.f32 %v643, 0.6931472
    %v645 = vlog2.pop %v492
    %v646 = vmul.f32 %v645, 0.6931472
    %v647 = vlog2.pop %v493
    %v648 = vmul.f32 %v647, 0.6931472
    %v649 = vlog2.pop %v494
    %v650 = vmul.f32 %v649, 0.6931472
    %v651 = vlog2.pop %v495
    %v652 = vmul.f32 %v651, 0.6931472
    %v653 = vlog2.pop %v496
    %v654 = vmul.f32 %v653, 0.6931472
    %v655 = vlog2.pop %v497
    %v656 = vmul.f32 %v655, 0.6931472
    %v657 = vlog2.pop %v498
    %v658 = vmul.f32 %v657, 0.6931472
    %v659 = vmul.f32 %v628, -2.0
    %v660 = vmul.f32 %v630, -2.0
    %v661 = vmul.f32 %v632, -2.0
    %v662 = vmul.f32 %v634, -2.0
    %v663 = vmul.f32 %v636, -2.0
    %v664 = vmul.f32 %v638, -2.0
    %v665 = vmul.f32 %v640, -2.0
    %v666 = vmul.f32 %v642, -2.0
    %v667 = vmul.f32 %v644, -2.0
    %v668 = vmul.f32 %v646, -2.0
    %v669 = vmul.f32 %v648, -2.0
    %v670 = vmul.f32 %v650, -2.0
    %v671 = vmul.f32 %v652, -2.0
    %v672 = vmul.f32 %v654, -2.0
    %v673 = vmul.f32 %v656, -2.0
    %v674 = vmul.f32 %v658, -2.0
    %v675 = vrsqrt.pop %v659
    %v676 = vmul.f32 %v659, %v675
    %vm677 = vcmp.eq.f32.partialorder %v659, inf
    %v678 = vsel %vm677, %v659, %v676
    %vm679 = vcmp.eq.f32.partialorder %v659, 0.0
    %v680 = vand.u32 %v659, 2147483648
    %v681 = vsel %vm679, %v680, %v678
    %v682 = vrsqrt.pop %v660
    %v683 = vmul.f32 %v660, %v682
    %vm684 = vcmp.eq.f32.partialorder %v660, inf
    %v685 = vsel %vm684, %v660, %v683
    %vm686 = vcmp.eq.f32.partialorder %v660, 0.0
    %v687 = vand.u32 %v660, 2147483648
    %v688 = vsel %vm686, %v687, %v685
    %v689 = vrsqrt.pop %v661
    %v690 = vmul.f32 %v661, %v689
    %vm691 = vcmp.eq.f32.partialorder %v661, inf
    %v692 = vsel %vm691, %v661, %v690
    %vm693 = vcmp.eq.f32.partialorder %v661, 0.0
    %v694 = vand.u32 %v661, 2147483648
    %v695 = vsel %vm693, %v694, %v692
    %v696 = vrsqrt.pop %v662
    %v697 = vmul.f32 %v662, %v696
    %vm698 = vcmp.eq.f32.partialorder %v662, inf
    %v699 = vsel %vm698, %v662, %v697
    %vm700 = vcmp.eq.f32.partialorder %v662, 0.0
    %v701 = vand.u32 %v662, 2147483648
    %v702 = vsel %vm700, %v701, %v699
    %v703 = vrsqrt.pop %v663
    %v704 = vmul.f32 %v663, %v703
    %vm705 = vcmp.eq.f32.partialorder %v663, inf
    %v706 = vsel %vm705, %v663, %v704
    %vm707 = vcmp.eq.f32.partialorder %v663, 0.0
    %v708 = vand.u32 %v663, 2147483648
    %v709 = vsel %vm707, %v708, %v706
    %v710 = vrsqrt.pop %v664
    %v711 = vmul.f32 %v664, %v710
    %vm712 = vcmp.eq.f32.partialorder %v664, inf
    %v713 = vsel %vm712, %v664, %v711
    %vm714 = vcmp.eq.f32.partialorder %v664, 0.0
    %v715 = vand.u32 %v664, 2147483648
    %v716 = vsel %vm714, %v715, %v713
    %v717 = vrsqrt.pop %v665
    %v718 = vmul.f32 %v665, %v717
    %vm719 = vcmp.eq.f32.partialorder %v665, inf
    %v720 = vsel %vm719, %v665, %v718
    %vm721 = vcmp.eq.f32.partialorder %v665, 0.0
    %v722 = vand.u32 %v665, 2147483648
    %v723 = vsel %vm721, %v722, %v720
    %v724 = vrsqrt.pop %v666
    %v725 = vmul.f32 %v666, %v724
    %vm726 = vcmp.eq.f32.partialorder %v666, inf
    %v727 = vsel %vm726, %v666, %v725
    %vm728 = vcmp.eq.f32.partialorder %v666, 0.0
    %v729 = vand.u32 %v666, 2147483648
    %v730 = vsel %vm728, %v729, %v727
    %v731 = vrsqrt.pop %v667
    %v732 = vmul.f32 %v667, %v731
    %vm733 = vcmp.eq.f32.partialorder %v667, inf
    %v734 = vsel %vm733, %v667, %v732
    %vm735 = vcmp.eq.f32.partialorder %v667, 0.0
    %v736 = vand.u32 %v667, 2147483648
    %v737 = vsel %vm735, %v736, %v734
    %v738 = vrsqrt.pop %v668
    %v739 = vmul.f32 %v668, %v738
    %vm740 = vcmp.eq.f32.partialorder %v668, inf
    %v741 = vsel %vm740, %v668, %v739
    %vm742 = vcmp.eq.f32.partialorder %v668, 0.0
    %v743 = vand.u32 %v668, 2147483648
    %v744 = vsel %vm742, %v743, %v741
    %v745 = vrsqrt.pop %v669
    %v746 = vmul.f32 %v669, %v745
    %vm747 = vcmp.eq.f32.partialorder %v669, inf
    %v748 = vsel %vm747, %v669, %v746
    %vm749 = vcmp.eq.f32.partialorder %v669, 0.0
    %v750 = vand.u32 %v669, 2147483648
    %v751 = vsel %vm749, %v750, %v748
    %v752 = vrsqrt.pop %v670
    %v753 = vmul.f32 %v670, %v752
    %vm754 = vcmp.eq.f32.partialorder %v670, inf
    %v755 = vsel %vm754, %v670, %v753
    %vm756 = vcmp.eq.f32.partialorder %v670, 0.0
    %v757 = vand.u32 %v670, 2147483648
    %v758 = vsel %vm756, %v757, %v755
    %v759 = vrsqrt.pop %v671
    %v760 = vmul.f32 %v671, %v759
    %vm761 = vcmp.eq.f32.partialorder %v671, inf
    %v762 = vsel %vm761, %v671, %v760
    %vm763 = vcmp.eq.f32.partialorder %v671, 0.0
    %v764 = vand.u32 %v671, 2147483648
    %v765 = vsel %vm763, %v764, %v762
    %v766 = vrsqrt.pop %v672
    %v767 = vmul.f32 %v672, %v766
    %vm768 = vcmp.eq.f32.partialorder %v672, inf
    %v769 = vsel %vm768, %v672, %v767
    %vm770 = vcmp.eq.f32.partialorder %v672, 0.0
    %v771 = vand.u32 %v672, 2147483648
    %v772 = vsel %vm770, %v771, %v769
    %v773 = vrsqrt.pop %v673
    %v774 = vmul.f32 %v673, %v773
    %vm775 = vcmp.eq.f32.partialorder %v673, inf
    %v776 = vsel %vm775, %v673, %v774
    %vm777 = vcmp.eq.f32.partialorder %v673, 0.0
    %v778 = vand.u32 %v673, 2147483648
    %v779 = vsel %vm777, %v778, %v776
    %v780 = vrsqrt.pop %v674
    %v781 = vmul.f32 %v674, %v780
    %vm782 = vcmp.eq.f32.partialorder %v674, inf
    %v783 = vsel %vm782, %v674, %v781
    %vm784 = vcmp.eq.f32.partialorder %v674, 0.0
    %v785 = vand.u32 %v674, 2147483648
    %v786 = vsel %vm784, %v785, %v783
    %v787 = vmul.f32 %v611, 6.2831855
    %v788 = vmul.f32 %v612, 6.2831855
    %v789 = vmul.f32 %v613, 6.2831855
    %v790 = vmul.f32 %v614, 6.2831855
    %v791 = vmul.f32 %v615, 6.2831855
    %v792 = vmul.f32 %v616, 6.2831855
    %v793 = vmul.f32 %v617, 6.2831855
    %v794 = vmul.f32 %v618, 6.2831855
    %v795 = vmul.f32 %v619, 6.2831855
    %v796 = vmul.f32 %v620, 6.2831855
    %v797 = vmul.f32 %v621, 6.2831855
    %v798 = vmul.f32 %v622, 6.2831855
    %v799 = vmul.f32 %v623, 6.2831855
    %v800 = vmul.f32 %v624, 6.2831855
    %v801 = vmul.f32 %v625, 6.2831855
    %v802 = vmul.f32 %v626, 6.2831855
    %v803 = vand.u32 2147483647, %v787
    %vm804 = vcmp.le.f32.partialorder %v803, 0.7853982
    %vm805 = vcmp.lt.s32.totalorder %v787, 0
    %v806 = vand.u32 %v787, 2139095040
    %v807 = vshrl.u32 %v806, 23
    %v808 = vsub.s32 %v807, 127
    %v809 = vand.u32 2147483647, %v787
    %v810 = vand.u32 %v809, 8388607
    %v811 = vor.u32 %v810, 8388608
    %v812 = vsub.s32 0, %v811
    %v813 = vadd.s32 %v808, 1
    %vm814 = vcmp.gt.s32.totalorder %v813, 0
    %v815 = vsel %vm814, %v813, 0
    %v816 = vshrl.u32 %v815, 5
    %v817 = vand.u32 %v815, 31
    %v818 = vsub.s32 32, %v817
    %v819 = vshrl.u32 683565275, %v818
    %v820 = vshll.u32 683565275, %v817
    %v821 = vshrl.u32 2475754826, %v818
    %v822 = vor.u32 %v820, %v821
    %v823 = vshll.u32 2475754826, %v817
    %v824 = vshrl.u32 2131351028, %v818
    %v825 = vor.u32 %v823, %v824
    %v826 = vshll.u32 2131351028, %v817
    %v827 = vshrl.u32 2102212464, %v818
    %v828 = vor.u32 %v826, %v827
    %v829 = vshll.u32 2102212464, %v817
    %v830 = vshrl.u32 920167782, %v818
    %v831 = vor.u32 %v829, %v830
    %v832 = vshll.u32 920167782, %v817
    %v833 = vshrl.u32 1326507024, %v818
    %v834 = vor.u32 %v832, %v833
    %vm835 = vcmp.lt.s32.totalorder %v816, 1
    %vm836 = vcmp.lt.s32.totalorder %v816, 2
    %vm837 = vcmp.lt.s32.totalorder %v816, 3
    %vm838 = vcmp.lt.s32.totalorder %v816, 4
    %v839 = vsel %vm835, %v819, %v822
    %v840 = vsel %vm838, %v828, 2102212464
    %v841 = vsel %vm837, %v825, %v840
    %v842 = vsel %vm836, %v839, %v841
    %v843 = vsel %vm835, %v822, %v825
    %v844 = vsel %vm838, %v831, 920167782
    %v845 = vsel %vm837, %v828, %v844
    %v846 = vsel %vm836, %v843, %v845
    %v847 = vsel %vm835, %v825, %v828
    %v848 = vsel %vm838, %v834, 1326507024
    %v849 = vsel %vm837, %v831, %v848
    %v850 = vsel %vm836, %v847, %v849
    %v851 = vshll.u32 %v811, 8
    %v852 = vmul.u32.u64.compose %v851, %v850
    %v853 = vextract.low.u32 %v852
    %v854 = vextract.high.u32 %v852
    %v855 = vmul.u32.u64.compose %v851, %v846
    %v856 = vextract.low.u32 %v855
    %v857 = vextract.high.u32 %v855
    %v858 = vmul.u32 %v851, %v842
    %v859 = vadd.s32 %v854, %v856
    %vm860 = vc.u32 %v854, %v856
    %v861 = vadd.s32 %v857, 1
    %v862 = vsel %vm860, %v861, %v857
    %v863 = vadd.s32 %v858, %v862
    %v864 = vadd.s32 %v863, 536870912
    %v865 = vshrl.u32 %v864, 30
    %v866 = vshll.u32 %v865, 30
    %v867 = vsub.s32 %v863, %v866
    %vm868 = vcmp.lt.s32.totalorder %v867, 0
    %v869 = vsub.s32 0, %v867
    %v870 = vsel %vm868, %v869, %v867
    %v871 = vclz %v870
    %v872 = vsub.s32 %v871, 2
    %vm873 = vcmp.gt.s32.totalorder 0, %v872
    %v874 = vsel %vm873, 0, %v872
    %v875 = vsub.s32 32, %v874
    %v876 = vshll.u32 %v867, %v874
    %v877 = vshrl.u32 %v859, %v875
    %v878 = vor.u32 %v876, %v877
    %v879 = vsub.s32 4294967266, %v874
    %v880 = vadd.s32 %v879, 127
    %v881 = vshll.u32 %v880, 23
    %v882 = vor.u32 4788187, %v881
    %v883 = vand.u32 2147483647, %v882
    %v885 = vcvt.s32.f32 %v878
    %v886 = vmul.f32 %v885, %v883
    %v887 = vxor.u32 %v886, 2147483648
    %v888 = vsel %vm805, %v887, %v886
    %v889 = vsub.s32 4, %v865
    %v890 = vsel %vm805, %v889, %v865
    %v891 = vsel %vm804, %v787, %v888
    %v892 = vsel %vm804, 0, %v890
    %v893 = vcosq.f32.pop %v891
    %v894 = vsinq.f32.pop %v891
    %vm895 = vweird.f32 %v787
    %v896 = vand.u32 %v892, 3
    %vm897 = vcmp.lt.s32.totalorder %v896, 2
    %vm898 = vcmp.eq.s32.totalorder %v896, 0
    %v899 = vxor.u32 %v894, 2147483648
    %v900 = vsel %vm898, %v893, %v899
    %vm901 = vcmp.eq.s32.totalorder %v896, 2
    %v902 = vxor.u32 %v893, 2147483648
    %v903 = vsel %vm901, %v902, %v894
    %v904 = vsel %vm897, %v900, %v903
    %v905 = vsel %vm895, nan, %v904
    %v906 = vand.u32 2147483647, %v788
    %vm907 = vcmp.le.f32.partialorder %v906, 0.7853982
    %vm908 = vcmp.lt.s32.totalorder %v788, 0
    %v909 = vand.u32 %v788, 2139095040
    %v910 = vshrl.u32 %v909, 23
    %v911 = vsub.s32 %v910, 127
    %v912 = vand.u32 2147483647, %v788
    %v913 = vand.u32 %v912, 8388607
    %v914 = vor.u32 %v913, 8388608
    %v915 = vsub.s32 0, %v914
    %v916 = vadd.s32 %v911, 1
    %vm917 = vcmp.gt.s32.totalorder %v916, 0
    %v918 = vsel %vm917, %v916, 0
    %v919 = vshrl.u32 %v918, 5
    %v920 = vand.u32 %v918, 31
    %v921 = vsub.s32 32, %v920
    %v922 = vshrl.u32 683565275, %v921
    %v923 = vshll.u32 683565275, %v920
    %v924 = vshrl.u32 2475754826, %v921
    %v925 = vor.u32 %v923, %v924
    %v926 = vshll.u32 2475754826, %v920
    %v927 = vshrl.u32 2131351028, %v921
    %v928 = vor.u32 %v926, %v927
    %v929 = vshll.u32 2131351028, %v920
    %v930 = vshrl.u32 2102212464, %v921
    %v931 = vor.u32 %v929, %v930
    %v932 = vshll.u32 2102212464, %v920
    %v933 = vshrl.u32 920167782, %v921
    %v934 = vor.u32 %v932, %v933
    %v935 = vshll.u32 920167782, %v920
    %v936 = vshrl.u32 1326507024, %v921
    %v937 = vor.u32 %v935, %v936
    %vm938 = vcmp.lt.s32.totalorder %v919, 1
    %vm939 = vcmp.lt.s32.totalorder %v919, 2
    %vm940 = vcmp.lt.s32.totalorder %v919, 3
    %vm941 = vcmp.lt.s32.totalorder %v919, 4
    %v942 = vsel %vm938, %v922, %v925
    %v943 = vsel %vm941, %v931, 2102212464
    %v944 = vsel %vm940, %v928, %v943
    %v945 = vsel %vm939, %v942, %v944
    %v946 = vsel %vm938, %v925, %v928
    %v947 = vsel %vm941, %v934, 920167782
    %v948 = vsel %vm940, %v931, %v947
    %v949 = vsel %vm939, %v946, %v948
    %v950 = vsel %vm938, %v928, %v931
    %v951 = vsel %vm941, %v937, 1326507024
    %v952 = vsel %vm940, %v934, %v951
    %v953 = vsel %vm939, %v950, %v952
    %v954 = vshll.u32 %v914, 8
    %v955 = vmul.u32.u64.compose %v954, %v953
    %v956 = vextract.low.u32 %v955
    %v957 = vextract.high.u32 %v955
    %v958 = vmul.u32.u64.compose %v954, %v949
    %v959 = vextract.low.u32 %v958
    %v960 = vextract.high.u32 %v958
    %v961 = vmul.u32 %v954, %v945
    %v962 = vadd.s32 %v957, %v959
    %vm963 = vc.u32 %v957, %v959
    %v964 = vadd.s32 %v960, 1
    %v965 = vsel %vm963, %v964, %v960
    %v966 = vadd.s32 %v961, %v965
    %v967 = vadd.s32 %v966, 536870912
    %v968 = vshrl.u32 %v967, 30
    %v969 = vshll.u32 %v968, 30
    %v970 = vsub.s32 %v966, %v969
    %vm971 = vcmp.lt.s32.totalorder %v970, 0
    %v972 = vsub.s32 0, %v970
    %v973 = vsel %vm971, %v972, %v970
    %v974 = vclz %v973
    %v975 = vsub.s32 %v974, 2
    %vm976 = vcmp.gt.s32.totalorder 0, %v975
    %v977 = vsel %vm976, 0, %v975
    %v978 = vsub.s32 32, %v977
    %v979 = vshll.u32 %v970, %v977
    %v980 = vshrl.u32 %v962, %v978
    %v981 = vor.u32 %v979, %v980
    %v982 = vsub.s32 4294967266, %v977
    %v983 = vadd.s32 %v982, 127
    %v984 = vshll.u32 %v983, 23
    %v985 = vor.u32 4788187, %v984
    %v986 = vand.u32 2147483647, %v985
    %v988 = vcvt.s32.f32 %v981
    %v989 = vmul.f32 %v988, %v986
    %v990 = vxor.u32 %v989, 2147483648
    %v991 = vsel %vm908, %v990, %v989
    %v992 = vsub.s32 4, %v968
    %v993 = vsel %vm908, %v992, %v968
    %v994 = vsel %vm907, %v788, %v991
    %v995 = vsel %vm907, 0, %v993
    %v996 = vcosq.f32.pop %v994
    %v997 = vsinq.f32.pop %v994
    %vm998 = vweird.f32 %v788
    %v999 = vand.u32 %v995, 3
    %vm1000 = vcmp.lt.s32.totalorder %v999, 2
    %vm1001 = vcmp.eq.s32.totalorder %v999, 0
    %v1002 = vxor.u32 %v997, 2147483648
    %v1003 = vsel %vm1001, %v996, %v1002
    %vm1004 = vcmp.eq.s32.totalorder %v999, 2
    %v1005 = vxor.u32 %v996, 2147483648
    %v1006 = vsel %vm1004, %v1005, %v997
    %v1007 = vsel %vm1000, %v1003, %v1006
    %v1008 = vsel %vm998, nan, %v1007
    %v1009 = vand.u32 2147483647, %v789
    %vm1010 = vcmp.le.f32.partialorder %v1009, 0.7853982
    %vm1011 = vcmp.lt.s32.totalorder %v789, 0
    %v1012 = vand.u32 %v789, 2139095040
    %v1013 = vshrl.u32 %v1012, 23
    %v1014 = vsub.s32 %v1013, 127
    %v1015 = vand.u32 2147483647, %v789
    %v1016 = vand.u32 %v1015, 8388607
    %v1017 = vor.u32 %v1016, 8388608
    %v1018 = vsub.s32 0, %v1017
    %v1019 = vadd.s32 %v1014, 1
    %vm1020 = vcmp.gt.s32.totalorder %v1019, 0
    %v1021 = vsel %vm1020, %v1019, 0
    %v1022 = vshrl.u32 %v1021, 5
    %v1023 = vand.u32 %v1021, 31
    %v1024 = vsub.s32 32, %v1023
    %v1025 = vshrl.u32 683565275, %v1024
    %v1026 = vshll.u32 683565275, %v1023
    %v1027 = vshrl.u32 2475754826, %v1024
    %v1028 = vor.u32 %v1026, %v1027
    %v1029 = vshll.u32 2475754826, %v1023
    %v1030 = vshrl.u32 2131351028, %v1024
    %v1031 = vor.u32 %v1029, %v1030
    %v1032 = vshll.u32 2131351028, %v1023
    %v1033 = vshrl.u32 2102212464, %v1024
    %v1034 = vor.u32 %v1032, %v1033
    %v1035 = vshll.u32 2102212464, %v1023
    %v1036 = vshrl.u32 920167782, %v1024
    %v1037 = vor.u32 %v1035, %v1036
    %v1038 = vshll.u32 920167782, %v1023
    %v1039 = vshrl.u32 1326507024, %v1024
    %v1040 = vor.u32 %v1038, %v1039
    %vm1041 = vcmp.lt.s32.totalorder %v1022, 1
    %vm1042 = vcmp.lt.s32.totalorder %v1022, 2
    %vm1043 = vcmp.lt.s32.totalorder %v1022, 3
    %vm1044 = vcmp.lt.s32.totalorder %v1022, 4
    %v1045 = vsel %vm1041, %v1025, %v1028
    %v1046 = vsel %vm1044, %v1034, 2102212464
    %v1047 = vsel %vm1043, %v1031, %v1046
    %v1048 = vsel %vm1042, %v1045, %v1047
    %v1049 = vsel %vm1041, %v1028, %v1031
    %v1050 = vsel %vm1044, %v1037, 920167782
    %v1051 = vsel %vm1043, %v1034, %v1050
    %v1052 = vsel %vm1042, %v1049, %v1051
    %v1053 = vsel %vm1041, %v1031, %v1034
    %v1054 = vsel %vm1044, %v1040, 1326507024
    %v1055 = vsel %vm1043, %v1037, %v1054
    %v1056 = vsel %vm1042, %v1053, %v1055
    %v1057 = vshll.u32 %v1017, 8
    %v1058 = vmul.u32.u64.compose %v1057, %v1056
    %v1059 = vextract.low.u32 %v1058
    %v1060 = vextract.high.u32 %v1058
    %v1061 = vmul.u32.u64.compose %v1057, %v1052
    %v1062 = vextract.low.u32 %v1061
    %v1063 = vextract.high.u32 %v1061
    %v1064 = vmul.u32 %v1057, %v1048
    %v1065 = vadd.s32 %v1060, %v1062
    %vm1066 = vc.u32 %v1060, %v1062
    %v1067 = vadd.s32 %v1063, 1
    %v1068 = vsel %vm1066, %v1067, %v1063
    %v1069 = vadd.s32 %v1064, %v1068
    %v1070 = vadd.s32 %v1069, 536870912
    %v1071 = vshrl.u32 %v1070, 30
    %v1072 = vshll.u32 %v1071, 30
    %v1073 = vsub.s32 %v1069, %v1072
    %vm1074 = vcmp.lt.s32.totalorder %v1073, 0
    %v1075 = vsub.s32 0, %v1073
    %v1076 = vsel %vm1074, %v1075, %v1073
    %v1077 = vclz %v1076
    %v1078 = vsub.s32 %v1077, 2
    %vm1079 = vcmp.gt.s32.totalorder 0, %v1078
    %v1080 = vsel %vm1079, 0, %v1078
    %v1081 = vsub.s32 32, %v1080
    %v1082 = vshll.u32 %v1073, %v1080
    %v1083 = vshrl.u32 %v1065, %v1081
    %v1084 = vor.u32 %v1082, %v1083
    %v1085 = vsub.s32 4294967266, %v1080
    %v1086 = vadd.s32 %v1085, 127
    %v1087 = vshll.u32 %v1086, 23
    %v1088 = vor.u32 4788187, %v1087
    %v1089 = vand.u32 2147483647, %v1088
    %v1091 = vcvt.s32.f32 %v1084
    %v1092 = vmul.f32 %v1091, %v1089
    %v1093 = vxor.u32 %v1092, 2147483648
    %v1094 = vsel %vm1011, %v1093, %v1092
    %v1095 = vsub.s32 4, %v1071
    %v1096 = vsel %vm1011, %v1095, %v1071
    %v1097 = vsel %vm1010, %v789, %v1094
    %v1098 = vsel %vm1010, 0, %v1096
    %v1099 = vcosq.f32.pop %v1097
    %v1100 = vsinq.f32.pop %v1097
    %vm1101 = vweird.f32 %v789
    %v1102 = vand.u32 %v1098, 3
    %vm1103 = vcmp.lt.s32.totalorder %v1102, 2
    %vm1104 = vcmp.eq.s32.totalorder %v1102, 0
    %v1105 = vxor.u32 %v1100, 2147483648
    %v1106 = vsel %vm1104, %v1099, %v1105
    %vm1107 = vcmp.eq.s32.totalorder %v1102, 2
    %v1108 = vxor.u32 %v1099, 2147483648
    %v1109 = vsel %vm1107, %v1108, %v1100
    %v1110 = vsel %vm1103, %v1106, %v1109
    %v1111 = vsel %vm1101, nan, %v1110
    %v1112 = vand.u32 2147483647, %v790
    %vm1113 = vcmp.le.f32.partialorder %v1112, 0.7853982
    %vm1114 = vcmp.lt.s32.totalorder %v790, 0
    %v1115 = vand.u32 %v790, 2139095040
    %v1116 = vshrl.u32 %v1115, 23
    %v1117 = vsub.s32 %v1116, 127
    %v1118 = vand.u32 2147483647, %v790
    %v1119 = vand.u32 %v1118, 8388607
    %v1120 = vor.u32 %v1119, 8388608
    %v1121 = vsub.s32 0, %v1120
    %v1122 = vadd.s32 %v1117, 1
    %vm1123 = vcmp.gt.s32.totalorder %v1122, 0
    %v1124 = vsel %vm1123, %v1122, 0
    %v1125 = vshrl.u32 %v1124, 5
    %v1126 = vand.u32 %v1124, 31
    %v1127 = vsub.s32 32, %v1126
    %v1128 = vshrl.u32 683565275, %v1127
    %v1129 = vshll.u32 683565275, %v1126
    %v1130 = vshrl.u32 2475754826, %v1127
    %v1131 = vor.u32 %v1129, %v1130
    %v1132 = vshll.u32 2475754826, %v1126
    %v1133 = vshrl.u32 2131351028, %v1127
    %v1134 = vor.u32 %v1132, %v1133
    %v1135 = vshll.u32 2131351028, %v1126
    %v1136 = vshrl.u32 2102212464, %v1127
    %v1137 = vor.u32 %v1135, %v1136
    %v1138 = vshll.u32 2102212464, %v1126
    %v1139 = vshrl.u32 920167782, %v1127
    %v1140 = vor.u32 %v1138, %v1139
    %v1141 = vshll.u32 920167782, %v1126
    %v1142 = vshrl.u32 1326507024, %v1127
    %v1143 = vor.u32 %v1141, %v1142
    %vm1144 = vcmp.lt.s32.totalorder %v1125, 1
    %vm1145 = vcmp.lt.s32.totalorder %v1125, 2
    %vm1146 = vcmp.lt.s32.totalorder %v1125, 3
    %vm1147 = vcmp.lt.s32.totalorder %v1125, 4
    %v1148 = vsel %vm1144, %v1128, %v1131
    %v1149 = vsel %vm1147, %v1137, 2102212464
    %v1150 = vsel %vm1146, %v1134, %v1149
    %v1151 = vsel %vm1145, %v1148, %v1150
    %v1152 = vsel %vm1144, %v1131, %v1134
    %v1153 = vsel %vm1147, %v1140, 920167782
    %v1154 = vsel %vm1146, %v1137, %v1153
    %v1155 = vsel %vm1145, %v1152, %v1154
    %v1156 = vsel %vm1144, %v1134, %v1137
    %v1157 = vsel %vm1147, %v1143, 1326507024
    %v1158 = vsel %vm1146, %v1140, %v1157
    %v1159 = vsel %vm1145, %v1156, %v1158
    %v1160 = vshll.u32 %v1120, 8
    %v1161 = vmul.u32.u64.compose %v1160, %v1159
    %v1162 = vextract.low.u32 %v1161
    %v1163 = vextract.high.u32 %v1161
    %v1164 = vmul.u32.u64.compose %v1160, %v1155
    %v1165 = vextract.low.u32 %v1164
    %v1166 = vextract.high.u32 %v1164
    %v1167 = vmul.u32 %v1160, %v1151
    %v1168 = vadd.s32 %v1163, %v1165
    %vm1169 = vc.u32 %v1163, %v1165
    %v1170 = vadd.s32 %v1166, 1
    %v1171 = vsel %vm1169, %v1170, %v1166
    %v1172 = vadd.s32 %v1167, %v1171
    %v1173 = vadd.s32 %v1172, 536870912
    %v1174 = vshrl.u32 %v1173, 30
    %v1175 = vshll.u32 %v1174, 30
    %v1176 = vsub.s32 %v1172, %v1175
    %vm1177 = vcmp.lt.s32.totalorder %v1176, 0
    %v1178 = vsub.s32 0, %v1176
    %v1179 = vsel %vm1177, %v1178, %v1176
    %v1180 = vclz %v1179
    %v1181 = vsub.s32 %v1180, 2
    %vm1182 = vcmp.gt.s32.totalorder 0, %v1181
    %v1183 = vsel %vm1182, 0, %v1181
    %v1184 = vsub.s32 32, %v1183
    %v1185 = vshll.u32 %v1176, %v1183
    %v1186 = vshrl.u32 %v1168, %v1184
    %v1187 = vor.u32 %v1185, %v1186
    %v1188 = vsub.s32 4294967266, %v1183
    %v1189 = vadd.s32 %v1188, 127
    %v1190 = vshll.u32 %v1189, 23
    %v1191 = vor.u32 4788187, %v1190
    %v1192 = vand.u32 2147483647, %v1191
    %v1194 = vcvt.s32.f32 %v1187
    %v1195 = vmul.f32 %v1194, %v1192
    %v1196 = vxor.u32 %v1195, 2147483648
    %v1197 = vsel %vm1114, %v1196, %v1195
    %v1198 = vsub.s32 4, %v1174
    %v1199 = vsel %vm1114, %v1198, %v1174
    %v1200 = vsel %vm1113, %v790, %v1197
    %v1201 = vsel %vm1113, 0, %v1199
    %v1202 = vcosq.f32.pop %v1200
    %v1203 = vsinq.f32.pop %v1200
    %vm1204 = vweird.f32 %v790
    %v1205 = vand.u32 %v1201, 3
    %vm1206 = vcmp.lt.s32.totalorder %v1205, 2
    %vm1207 = vcmp.eq.s32.totalorder %v1205, 0
    %v1208 = vxor.u32 %v1203, 2147483648
    %v1209 = vsel %vm1207, %v1202, %v1208
    %vm1210 = vcmp.eq.s32.totalorder %v1205, 2
    %v1211 = vxor.u32 %v1202, 2147483648
    %v1212 = vsel %vm1210, %v1211, %v1203
    %v1213 = vsel %vm1206, %v1209, %v1212
    %v1214 = vsel %vm1204, nan, %v1213
    %v1215 = vand.u32 2147483647, %v791
    %vm1216 = vcmp.le.f32.partialorder %v1215, 0.7853982
    %vm1217 = vcmp.lt.s32.totalorder %v791, 0
    %v1218 = vand.u32 %v791, 2139095040
    %v1219 = vshrl.u32 %v1218, 23
    %v1220 = vsub.s32 %v1219, 127
    %v1221 = vand.u32 2147483647, %v791
    %v1222 = vand.u32 %v1221, 8388607
    %v1223 = vor.u32 %v1222, 8388608
    %v1224 = vsub.s32 0, %v1223
    %v1225 = vadd.s32 %v1220, 1
    %vm1226 = vcmp.gt.s32.totalorder %v1225, 0
    %v1227 = vsel %vm1226, %v1225, 0
    %v1228 = vshrl.u32 %v1227, 5
    %v1229 = vand.u32 %v1227, 31
    %v1230 = vsub.s32 32, %v1229
    %v1231 = vshrl.u32 683565275, %v1230
    %v1232 = vshll.u32 683565275, %v1229
    %v1233 = vshrl.u32 2475754826, %v1230
    %v1234 = vor.u32 %v1232, %v1233
    %v1235 = vshll.u32 2475754826, %v1229
    %v1236 = vshrl.u32 2131351028, %v1230
    %v1237 = vor.u32 %v1235, %v1236
    %v1238 = vshll.u32 2131351028, %v1229
    %v1239 = vshrl.u32 2102212464, %v1230
    %v1240 = vor.u32 %v1238, %v1239
    %v1241 = vshll.u32 2102212464, %v1229
    %v1242 = vshrl.u32 920167782, %v1230
    %v1243 = vor.u32 %v1241, %v1242
    %v1244 = vshll.u32 920167782, %v1229
    %v1245 = vshrl.u32 1326507024, %v1230
    %v1246 = vor.u32 %v1244, %v1245
    %vm1247 = vcmp.lt.s32.totalorder %v1228, 1
    %vm1248 = vcmp.lt.s32.totalorder %v1228, 2
    %vm1249 = vcmp.lt.s32.totalorder %v1228, 3
    %vm1250 = vcmp.lt.s32.totalorder %v1228, 4
    %v1251 = vsel %vm1247, %v1231, %v1234
    %v1252 = vsel %vm1250, %v1240, 2102212464
    %v1253 = vsel %vm1249, %v1237, %v1252
    %v1254 = vsel %vm1248, %v1251, %v1253
    %v1255 = vsel %vm1247, %v1234, %v1237
    %v1256 = vsel %vm1250, %v1243, 920167782
    %v1257 = vsel %vm1249, %v1240, %v1256
    %v1258 = vsel %vm1248, %v1255, %v1257
    %v1259 = vsel %vm1247, %v1237, %v1240
    %v1260 = vsel %vm1250, %v1246, 1326507024
    %v1261 = vsel %vm1249, %v1243, %v1260
    %v1262 = vsel %vm1248, %v1259, %v1261
    %v1263 = vshll.u32 %v1223, 8
    %v1264 = vmul.u32.u64.compose %v1263, %v1262
    %v1265 = vextract.low.u32 %v1264
    %v1266 = vextract.high.u32 %v1264
    %v1267 = vmul.u32.u64.compose %v1263, %v1258
    %v1268 = vextract.low.u32 %v1267
    %v1269 = vextract.high.u32 %v1267
    %v1270 = vmul.u32 %v1263, %v1254
    %v1271 = vadd.s32 %v1266, %v1268
    %vm1272 = vc.u32 %v1266, %v1268
    %v1273 = vadd.s32 %v1269, 1
    %v1274 = vsel %vm1272, %v1273, %v1269
    %v1275 = vadd.s32 %v1270, %v1274
    %v1276 = vadd.s32 %v1275, 536870912
    %v1277 = vshrl.u32 %v1276, 30
    %v1278 = vshll.u32 %v1277, 30
    %v1279 = vsub.s32 %v1275, %v1278
    %vm1280 = vcmp.lt.s32.totalorder %v1279, 0
    %v1281 = vsub.s32 0, %v1279
    %v1282 = vsel %vm1280, %v1281, %v1279
    %v1283 = vclz %v1282
    %v1284 = vsub.s32 %v1283, 2
    %vm1285 = vcmp.gt.s32.totalorder 0, %v1284
    %v1286 = vsel %vm1285, 0, %v1284
    %v1287 = vsub.s32 32, %v1286
    %v1288 = vshll.u32 %v1279, %v1286
    %v1289 = vshrl.u32 %v1271, %v1287
    %v1290 = vor.u32 %v1288, %v1289
    %v1291 = vsub.s32 4294967266, %v1286
    %v1292 = vadd.s32 %v1291, 127
    %v1293 = vshll.u32 %v1292, 23
    %v1294 = vor.u32 4788187, %v1293
    %v1295 = vand.u32 2147483647, %v1294
    %v1297 = vcvt.s32.f32 %v1290
    %v1298 = vmul.f32 %v1297, %v1295
    %v1299 = vxor.u32 %v1298, 2147483648
    %v1300 = vsel %vm1217, %v1299, %v1298
    %v1301 = vsub.s32 4, %v1277
    %v1302 = vsel %vm1217, %v1301, %v1277
    %v1303 = vsel %vm1216, %v791, %v1300
    %v1304 = vsel %vm1216, 0, %v1302
    %v1305 = vcosq.f32.pop %v1303
    %v1306 = vsinq.f32.pop %v1303
    %vm1307 = vweird.f32 %v791
    %v1308 = vand.u32 %v1304, 3
    %vm1309 = vcmp.lt.s32.totalorder %v1308, 2
    %vm1310 = vcmp.eq.s32.totalorder %v1308, 0
    %v1311 = vxor.u32 %v1306, 2147483648
    %v1312 = vsel %vm1310, %v1305, %v1311
    %vm1313 = vcmp.eq.s32.totalorder %v1308, 2
    %v1314 = vxor.u32 %v1305, 2147483648
    %v1315 = vsel %vm1313, %v1314, %v1306
    %v1316 = vsel %vm1309, %v1312, %v1315
    %v1317 = vsel %vm1307, nan, %v1316
    %v1318 = vand.u32 2147483647, %v792
    %vm1319 = vcmp.le.f32.partialorder %v1318, 0.7853982
    %vm1320 = vcmp.lt.s32.totalorder %v792, 0
    %v1321 = vand.u32 %v792, 2139095040
    %v1322 = vshrl.u32 %v1321, 23
    %v1323 = vsub.s32 %v1322, 127
    %v1324 = vand.u32 2147483647, %v792
    %v1325 = vand.u32 %v1324, 8388607
    %v1326 = vor.u32 %v1325, 8388608
    %v1327 = vsub.s32 0, %v1326
    %v1328 = vadd.s32 %v1323, 1
    %vm1329 = vcmp.gt.s32.totalorder %v1328, 0
    %v1330 = vsel %vm1329, %v1328, 0
    %v1331 = vshrl.u32 %v1330, 5
    %v1332 = vand.u32 %v1330, 31
    %v1333 = vsub.s32 32, %v1332
    %v1334 = vshrl.u32 683565275, %v1333
    %v1335 = vshll.u32 683565275, %v1332
    %v1336 = vshrl.u32 2475754826, %v1333
    %v1337 = vor.u32 %v1335, %v1336
    %v1338 = vshll.u32 2475754826, %v1332
    %v1339 = vshrl.u32 2131351028, %v1333
    %v1340 = vor.u32 %v1338, %v1339
    %v1341 = vshll.u32 2131351028, %v1332
    %v1342 = vshrl.u32 2102212464, %v1333
    %v1343 = vor.u32 %v1341, %v1342
    %v1344 = vshll.u32 2102212464, %v1332
    %v1345 = vshrl.u32 920167782, %v1333
    %v1346 = vor.u32 %v1344, %v1345
    %v1347 = vshll.u32 920167782, %v1332
    %v1348 = vshrl.u32 1326507024, %v1333
    %v1349 = vor.u32 %v1347, %v1348
    %vm1350 = vcmp.lt.s32.totalorder %v1331, 1
    %vm1351 = vcmp.lt.s32.totalorder %v1331, 2
    %vm1352 = vcmp.lt.s32.totalorder %v1331, 3
    %vm1353 = vcmp.lt.s32.totalorder %v1331, 4
    %v1354 = vsel %vm1350, %v1334, %v1337
    %v1355 = vsel %vm1353, %v1343, 2102212464
    %v1356 = vsel %vm1352, %v1340, %v1355
    %v1357 = vsel %vm1351, %v1354, %v1356
    %v1358 = vsel %vm1350, %v1337, %v1340
    %v1359 = vsel %vm1353, %v1346, 920167782
    %v1360 = vsel %vm1352, %v1343, %v1359
    %v1361 = vsel %vm1351, %v1358, %v1360
    %v1362 = vsel %vm1350, %v1340, %v1343
    %v1363 = vsel %vm1353, %v1349, 1326507024
    %v1364 = vsel %vm1352, %v1346, %v1363
    %v1365 = vsel %vm1351, %v1362, %v1364
    %v1366 = vshll.u32 %v1326, 8
    %v1367 = vmul.u32.u64.compose %v1366, %v1365
    %v1368 = vextract.low.u32 %v1367
    %v1369 = vextract.high.u32 %v1367
    %v1370 = vmul.u32.u64.compose %v1366, %v1361
    %v1371 = vextract.low.u32 %v1370
    %v1372 = vextract.high.u32 %v1370
    %v1373 = vmul.u32 %v1366, %v1357
    %v1374 = vadd.s32 %v1369, %v1371
    %vm1375 = vc.u32 %v1369, %v1371
    %v1376 = vadd.s32 %v1372, 1
    %v1377 = vsel %vm1375, %v1376, %v1372
    %v1378 = vadd.s32 %v1373, %v1377
    %v1379 = vadd.s32 %v1378, 536870912
    %v1380 = vshrl.u32 %v1379, 30
    %v1381 = vshll.u32 %v1380, 30
    %v1382 = vsub.s32 %v1378, %v1381
    %vm1383 = vcmp.lt.s32.totalorder %v1382, 0
    %v1384 = vsub.s32 0, %v1382
    %v1385 = vsel %vm1383, %v1384, %v1382
    %v1386 = vclz %v1385
    %v1387 = vsub.s32 %v1386, 2
    %vm1388 = vcmp.gt.s32.totalorder 0, %v1387
    %v1389 = vsel %vm1388, 0, %v1387
    %v1390 = vsub.s32 32, %v1389
    %v1391 = vshll.u32 %v1382, %v1389
    %v1392 = vshrl.u32 %v1374, %v1390
    %v1393 = vor.u32 %v1391, %v1392
    %v1394 = vsub.s32 4294967266, %v1389
    %v1395 = vadd.s32 %v1394, 127
    %v1396 = vshll.u32 %v1395, 23
    %v1397 = vor.u32 4788187, %v1396
    %v1398 = vand.u32 2147483647, %v1397
    %v1400 = vcvt.s32.f32 %v1393
    %v1401 = vmul.f32 %v1400, %v1398
    %v1402 = vxor.u32 %v1401, 2147483648
    %v1403 = vsel %vm1320, %v1402, %v1401
    %v1404 = vsub.s32 4, %v1380
    %v1405 = vsel %vm1320, %v1404, %v1380
    %v1406 = vsel %vm1319, %v792, %v1403
    %v1407 = vsel %vm1319, 0, %v1405
    %v1408 = vcosq.f32.pop %v1406
    %v1409 = vsinq.f32.pop %v1406
    %vm1410 = vweird.f32 %v792
    %v1411 = vand.u32 %v1407, 3
    %vm1412 = vcmp.lt.s32.totalorder %v1411, 2
    %vm1413 = vcmp.eq.s32.totalorder %v1411, 0
    %v1414 = vxor.u32 %v1409, 2147483648
    %v1415 = vsel %vm1413, %v1408, %v1414
    %vm1416 = vcmp.eq.s32.totalorder %v1411, 2
    %v1417 = vxor.u32 %v1408, 2147483648
    %v1418 = vsel %vm1416, %v1417, %v1409
    %v1419 = vsel %vm1412, %v1415, %v1418
    %v1420 = vsel %vm1410, nan, %v1419
    %v1421 = vand.u32 2147483647, %v793
    %vm1422 = vcmp.le.f32.partialorder %v1421, 0.7853982
    %vm1423 = vcmp.lt.s32.totalorder %v793, 0
    %v1424 = vand.u32 %v793, 2139095040
    %v1425 = vshrl.u32 %v1424, 23
    %v1426 = vsub.s32 %v1425, 127
    %v1427 = vand.u32 2147483647, %v793
    %v1428 = vand.u32 %v1427, 8388607
    %v1429 = vor.u32 %v1428, 8388608
    %v1430 = vsub.s32 0, %v1429
    %v1431 = vadd.s32 %v1426, 1
    %vm1432 = vcmp.gt.s32.totalorder %v1431, 0
    %v1433 = vsel %vm1432, %v1431, 0
    %v1434 = vshrl.u32 %v1433, 5
    %v1435 = vand.u32 %v1433, 31
    %v1436 = vsub.s32 32, %v1435
    %v1437 = vshrl.u32 683565275, %v1436
    %v1438 = vshll.u32 683565275, %v1435
    %v1439 = vshrl.u32 2475754826, %v1436
    %v1440 = vor.u32 %v1438, %v1439
    %v1441 = vshll.u32 2475754826, %v1435
    %v1442 = vshrl.u32 2131351028, %v1436
    %v1443 = vor.u32 %v1441, %v1442
    %v1444 = vshll.u32 2131351028, %v1435
    %v1445 = vshrl.u32 2102212464, %v1436
    %v1446 = vor.u32 %v1444, %v1445
    %v1447 = vshll.u32 2102212464, %v1435
    %v1448 = vshrl.u32 920167782, %v1436
    %v1449 = vor.u32 %v1447, %v1448
    %v1450 = vshll.u32 920167782, %v1435
    %v1451 = vshrl.u32 1326507024, %v1436
    %v1452 = vor.u32 %v1450, %v1451
    %vm1453 = vcmp.lt.s32.totalorder %v1434, 1
    %vm1454 = vcmp.lt.s32.totalorder %v1434, 2
    %vm1455 = vcmp.lt.s32.totalorder %v1434, 3
    %vm1456 = vcmp.lt.s32.totalorder %v1434, 4
    %v1457 = vsel %vm1453, %v1437, %v1440
    %v1458 = vsel %vm1456, %v1446, 2102212464
    %v1459 = vsel %vm1455, %v1443, %v1458
    %v1460 = vsel %vm1454, %v1457, %v1459
    %v1461 = vsel %vm1453, %v1440, %v1443
    %v1462 = vsel %vm1456, %v1449, 920167782
    %v1463 = vsel %vm1455, %v1446, %v1462
    %v1464 = vsel %vm1454, %v1461, %v1463
    %v1465 = vsel %vm1453, %v1443, %v1446
    %v1466 = vsel %vm1456, %v1452, 1326507024
    %v1467 = vsel %vm1455, %v1449, %v1466
    %v1468 = vsel %vm1454, %v1465, %v1467
    %v1469 = vshll.u32 %v1429, 8
    %v1470 = vmul.u32.u64.compose %v1469, %v1468
    %v1471 = vextract.low.u32 %v1470
    %v1472 = vextract.high.u32 %v1470
    %v1473 = vmul.u32.u64.compose %v1469, %v1464
    %v1474 = vextract.low.u32 %v1473
    %v1475 = vextract.high.u32 %v1473
    %v1476 = vmul.u32 %v1469, %v1460
    %v1477 = vadd.s32 %v1472, %v1474
    %vm1478 = vc.u32 %v1472, %v1474
    %v1479 = vadd.s32 %v1475, 1
    %v1480 = vsel %vm1478, %v1479, %v1475
    %v1481 = vadd.s32 %v1476, %v1480
    %v1482 = vadd.s32 %v1481, 536870912
    %v1483 = vshrl.u32 %v1482, 30
    %v1484 = vshll.u32 %v1483, 30
    %v1485 = vsub.s32 %v1481, %v1484
    %vm1486 = vcmp.lt.s32.totalorder %v1485, 0
    %v1487 = vsub.s32 0, %v1485
    %v1488 = vsel %vm1486, %v1487, %v1485
    %v1489 = vclz %v1488
    %v1490 = vsub.s32 %v1489, 2
    %vm1491 = vcmp.gt.s32.totalorder 0, %v1490
    %v1492 = vsel %vm1491, 0, %v1490
    %v1493 = vsub.s32 32, %v1492
    %v1494 = vshll.u32 %v1485, %v1492
    %v1495 = vshrl.u32 %v1477, %v1493
    %v1496 = vor.u32 %v1494, %v1495
    %v1497 = vsub.s32 4294967266, %v1492
    %v1498 = vadd.s32 %v1497, 127
    %v1499 = vshll.u32 %v1498, 23
    %v1500 = vor.u32 4788187, %v1499
    %v1501 = vand.u32 2147483647, %v1500
    %v1503 = vcvt.s32.f32 %v1496
    %v1504 = vmul.f32 %v1503, %v1501
    %v1505 = vxor.u32 %v1504, 2147483648
    %v1506 = vsel %vm1423, %v1505, %v1504
    %v1507 = vsub.s32 4, %v1483
    %v1508 = vsel %vm1423, %v1507, %v1483
    %v1509 = vsel %vm1422, %v793, %v1506
    %v1510 = vsel %vm1422, 0, %v1508
    %v1511 = vcosq.f32.pop %v1509
    %v1512 = vsinq.f32.pop %v1509
    %vm1513 = vweird.f32 %v793
    %v1514 = vand.u32 %v1510, 3
    %vm1515 = vcmp.lt.s32.totalorder %v1514, 2
    %vm1516 = vcmp.eq.s32.totalorder %v1514, 0
    %v1517 = vxor.u32 %v1512, 2147483648
    %v1518 = vsel %vm1516, %v1511, %v1517
    %vm1519 = vcmp.eq.s32.totalorder %v1514, 2
    %v1520 = vxor.u32 %v1511, 2147483648
    %v1521 = vsel %vm1519, %v1520, %v1512
    %v1522 = vsel %vm1515, %v1518, %v1521
    %v1523 = vsel %vm1513, nan, %v1522
    %v1524 = vand.u32 2147483647, %v794
    %vm1525 = vcmp.le.f32.partialorder %v1524, 0.7853982
    %vm1526 = vcmp.lt.s32.totalorder %v794, 0
    %v1527 = vand.u32 %v794, 2139095040
    %v1528 = vshrl.u32 %v1527, 23
    %v1529 = vsub.s32 %v1528, 127
    %v1530 = vand.u32 2147483647, %v794
    %v1531 = vand.u32 %v1530, 8388607
    %v1532 = vor.u32 %v1531, 8388608
    %v1533 = vsub.s32 0, %v1532
    %v1534 = vadd.s32 %v1529, 1
    %vm1535 = vcmp.gt.s32.totalorder %v1534, 0
    %v1536 = vsel %vm1535, %v1534, 0
    %v1537 = vshrl.u32 %v1536, 5
    %v1538 = vand.u32 %v1536, 31
    %v1539 = vsub.s32 32, %v1538
    %v1540 = vshrl.u32 683565275, %v1539
    %v1541 = vshll.u32 683565275, %v1538
    %v1542 = vshrl.u32 2475754826, %v1539
    %v1543 = vor.u32 %v1541, %v1542
    %v1544 = vshll.u32 2475754826, %v1538
    %v1545 = vshrl.u32 2131351028, %v1539
    %v1546 = vor.u32 %v1544, %v1545
    %v1547 = vshll.u32 2131351028, %v1538
    %v1548 = vshrl.u32 2102212464, %v1539
    %v1549 = vor.u32 %v1547, %v1548
    %v1550 = vshll.u32 2102212464, %v1538
    %v1551 = vshrl.u32 920167782, %v1539
    %v1552 = vor.u32 %v1550, %v1551
    %v1553 = vshll.u32 920167782, %v1538
    %v1554 = vshrl.u32 1326507024, %v1539
    %v1555 = vor.u32 %v1553, %v1554
    %vm1556 = vcmp.lt.s32.totalorder %v1537, 1
    %vm1557 = vcmp.lt.s32.totalorder %v1537, 2
    %vm1558 = vcmp.lt.s32.totalorder %v1537, 3
    %vm1559 = vcmp.lt.s32.totalorder %v1537, 4
    %v1560 = vsel %vm1556, %v1540, %v1543
    %v1561 = vsel %vm1559, %v1549, 2102212464
    %v1562 = vsel %vm1558, %v1546, %v1561
    %v1563 = vsel %vm1557, %v1560, %v1562
    %v1564 = vsel %vm1556, %v1543, %v1546
    %v1565 = vsel %vm1559, %v1552, 920167782
    %v1566 = vsel %vm1558, %v1549, %v1565
    %v1567 = vsel %vm1557, %v1564, %v1566
    %v1568 = vsel %vm1556, %v1546, %v1549
    %v1569 = vsel %vm1559, %v1555, 1326507024
    %v1570 = vsel %vm1558, %v1552, %v1569
    %v1571 = vsel %vm1557, %v1568, %v1570
    %v1572 = vshll.u32 %v1532, 8
    %v1573 = vmul.u32.u64.compose %v1572, %v1571
    %v1574 = vextract.low.u32 %v1573
    %v1575 = vextract.high.u32 %v1573
    %v1576 = vmul.u32.u64.compose %v1572, %v1567
    %v1577 = vextract.low.u32 %v1576
    %v1578 = vextract.high.u32 %v1576
    %v1579 = vmul.u32 %v1572, %v1563
    %v1580 = vadd.s32 %v1575, %v1577
    %vm1581 = vc.u32 %v1575, %v1577
    %v1582 = vadd.s32 %v1578, 1
    %v1583 = vsel %vm1581, %v1582, %v1578
    %v1584 = vadd.s32 %v1579, %v1583
    %v1585 = vadd.s32 %v1584, 536870912
    %v1586 = vshrl.u32 %v1585, 30
    %v1587 = vshll.u32 %v1586, 30
    %v1588 = vsub.s32 %v1584, %v1587
    %vm1589 = vcmp.lt.s32.totalorder %v1588, 0
    %v1590 = vsub.s32 0, %v1588
    %v1591 = vsel %vm1589, %v1590, %v1588
    %v1592 = vclz %v1591
    %v1593 = vsub.s32 %v1592, 2
    %vm1594 = vcmp.gt.s32.totalorder 0, %v1593
    %v1595 = vsel %vm1594, 0, %v1593
    %v1596 = vsub.s32 32, %v1595
    %v1597 = vshll.u32 %v1588, %v1595
    %v1598 = vshrl.u32 %v1580, %v1596
    %v1599 = vor.u32 %v1597, %v1598
    %v1600 = vsub.s32 4294967266, %v1595
    %v1601 = vadd.s32 %v1600, 127
    %v1602 = vshll.u32 %v1601, 23
    %v1603 = vor.u32 4788187, %v1602
    %v1604 = vand.u32 2147483647, %v1603
    %v1606 = vcvt.s32.f32 %v1599
    %v1607 = vmul.f32 %v1606, %v1604
    %v1608 = vxor.u32 %v1607, 2147483648
    %v1609 = vsel %vm1526, %v1608, %v1607
    %v1610 = vsub.s32 4, %v1586
    %v1611 = vsel %vm1526, %v1610, %v1586
    %v1612 = vsel %vm1525, %v794, %v1609
    %v1613 = vsel %vm1525, 0, %v1611
    %v1614 = vcosq.f32.pop %v1612
    %v1615 = vsinq.f32.pop %v1612
    %vm1616 = vweird.f32 %v794
    %v1617 = vand.u32 %v1613, 3
    %vm1618 = vcmp.lt.s32.totalorder %v1617, 2
    %vm1619 = vcmp.eq.s32.totalorder %v1617, 0
    %v1620 = vxor.u32 %v1615, 2147483648
    %v1621 = vsel %vm1619, %v1614, %v1620
    %vm1622 = vcmp.eq.s32.totalorder %v1617, 2
    %v1623 = vxor.u32 %v1614, 2147483648
    %v1624 = vsel %vm1622, %v1623, %v1615
    %v1625 = vsel %vm1618, %v1621, %v1624
    %v1626 = vsel %vm1616, nan, %v1625
    %v1627 = vand.u32 2147483647, %v795
    %vm1628 = vcmp.le.f32.partialorder %v1627, 0.7853982
    %vm1629 = vcmp.lt.s32.totalorder %v795, 0
    %v1630 = vand.u32 %v795, 2139095040
    %v1631 = vshrl.u32 %v1630, 23
    %v1632 = vsub.s32 %v1631, 127
    %v1633 = vand.u32 2147483647, %v795
    %v1634 = vand.u32 %v1633, 8388607
    %v1635 = vor.u32 %v1634, 8388608
    %v1636 = vsub.s32 0, %v1635
    %v1637 = vadd.s32 %v1632, 1
    %vm1638 = vcmp.gt.s32.totalorder %v1637, 0
    %v1639 = vsel %vm1638, %v1637, 0
    %v1640 = vshrl.u32 %v1639, 5
    %v1641 = vand.u32 %v1639, 31
    %v1642 = vsub.s32 32, %v1641
    %v1643 = vshrl.u32 683565275, %v1642
    %v1644 = vshll.u32 683565275, %v1641
    %v1645 = vshrl.u32 2475754826, %v1642
    %v1646 = vor.u32 %v1644, %v1645
    %v1647 = vshll.u32 2475754826, %v1641
    %v1648 = vshrl.u32 2131351028, %v1642
    %v1649 = vor.u32 %v1647, %v1648
    %v1650 = vshll.u32 2131351028, %v1641
    %v1651 = vshrl.u32 2102212464, %v1642
    %v1652 = vor.u32 %v1650, %v1651
    %v1653 = vshll.u32 2102212464, %v1641
    %v1654 = vshrl.u32 920167782, %v1642
    %v1655 = vor.u32 %v1653, %v1654
    %v1656 = vshll.u32 920167782, %v1641
    %v1657 = vshrl.u32 1326507024, %v1642
    %v1658 = vor.u32 %v1656, %v1657
    %vm1659 = vcmp.lt.s32.totalorder %v1640, 1
    %vm1660 = vcmp.lt.s32.totalorder %v1640, 2
    %vm1661 = vcmp.lt.s32.totalorder %v1640, 3
    %vm1662 = vcmp.lt.s32.totalorder %v1640, 4
    %v1663 = vsel %vm1659, %v1643, %v1646
    %v1664 = vsel %vm1662, %v1652, 2102212464
    %v1665 = vsel %vm1661, %v1649, %v1664
    %v1666 = vsel %vm1660, %v1663, %v1665
    %v1667 = vsel %vm1659, %v1646, %v1649
    %v1668 = vsel %vm1662, %v1655, 920167782
    %v1669 = vsel %vm1661, %v1652, %v1668
    %v1670 = vsel %vm1660, %v1667, %v1669
    %v1671 = vsel %vm1659, %v1649, %v1652
    %v1672 = vsel %vm1662, %v1658, 1326507024
    %v1673 = vsel %vm1661, %v1655, %v1672
    %v1674 = vsel %vm1660, %v1671, %v1673
    %v1675 = vshll.u32 %v1635, 8
    %v1676 = vmul.u32.u64.compose %v1675, %v1674
    %v1677 = vextract.low.u32 %v1676
    %v1678 = vextract.high.u32 %v1676
    %v1679 = vmul.u32.u64.compose %v1675, %v1670
    %v1680 = vextract.low.u32 %v1679
    %v1681 = vextract.high.u32 %v1679
    %v1682 = vmul.u32 %v1675, %v1666
    %v1683 = vadd.s32 %v1678, %v1680
    %vm1684 = vc.u32 %v1678, %v1680
    %v1685 = vadd.s32 %v1681, 1
    %v1686 = vsel %vm1684, %v1685, %v1681
    %v1687 = vadd.s32 %v1682, %v1686
    %v1688 = vadd.s32 %v1687, 536870912
    %v1689 = vshrl.u32 %v1688, 30
    %v1690 = vshll.u32 %v1689, 30
    %v1691 = vsub.s32 %v1687, %v1690
    %vm1692 = vcmp.lt.s32.totalorder %v1691, 0
    %v1693 = vsub.s32 0, %v1691
    %v1694 = vsel %vm1692, %v1693, %v1691
    %v1695 = vclz %v1694
    %v1696 = vsub.s32 %v1695, 2
    %vm1697 = vcmp.gt.s32.totalorder 0, %v1696
    %v1698 = vsel %vm1697, 0, %v1696
    %v1699 = vsub.s32 32, %v1698
    %v1700 = vshll.u32 %v1691, %v1698
    %v1701 = vshrl.u32 %v1683, %v1699
    %v1702 = vor.u32 %v1700, %v1701
    %v1703 = vsub.s32 4294967266, %v1698
    %v1704 = vadd.s32 %v1703, 127
    %v1705 = vshll.u32 %v1704, 23
    %v1706 = vor.u32 4788187, %v1705
    %v1707 = vand.u32 2147483647, %v1706
    %v1709 = vcvt.s32.f32 %v1702
    %v1710 = vmul.f32 %v1709, %v1707
    %v1711 = vxor.u32 %v1710, 2147483648
    %v1712 = vsel %vm1629, %v1711, %v1710
    %v1713 = vsub.s32 4, %v1689
    %v1714 = vsel %vm1629, %v1713, %v1689
    %v1715 = vsel %vm1628, %v795, %v1712
    %v1716 = vsel %vm1628, 0, %v1714
    %v1717 = vcosq.f32.pop %v1715
    %v1718 = vsinq.f32.pop %v1715
    %vm1719 = vweird.f32 %v795
    %v1720 = vand.u32 %v1716, 3
    %vm1721 = vcmp.lt.s32.totalorder %v1720, 2
    %vm1722 = vcmp.eq.s32.totalorder %v1720, 0
    %v1723 = vxor.u32 %v1718, 2147483648
    %v1724 = vsel %vm1722, %v1717, %v1723
    %vm1725 = vcmp.eq.s32.totalorder %v1720, 2
    %v1726 = vxor.u32 %v1717, 2147483648
    %v1727 = vsel %vm1725, %v1726, %v1718
    %v1728 = vsel %vm1721, %v1724, %v1727
    %v1729 = vsel %vm1719, nan, %v1728
    %v1730 = vand.u32 2147483647, %v796
    %vm1731 = vcmp.le.f32.partialorder %v1730, 0.7853982
    %vm1732 = vcmp.lt.s32.totalorder %v796, 0
    %v1733 = vand.u32 %v796, 2139095040
    %v1734 = vshrl.u32 %v1733, 23
    %v1735 = vsub.s32 %v1734, 127
    %v1736 = vand.u32 2147483647, %v796
    %v1737 = vand.u32 %v1736, 8388607
    %v1738 = vor.u32 %v1737, 8388608
    %v1739 = vsub.s32 0, %v1738
    %v1740 = vadd.s32 %v1735, 1
    %vm1741 = vcmp.gt.s32.totalorder %v1740, 0
    %v1742 = vsel %vm1741, %v1740, 0
    %v1743 = vshrl.u32 %v1742, 5
    %v1744 = vand.u32 %v1742, 31
    %v1745 = vsub.s32 32, %v1744
    %v1746 = vshrl.u32 683565275, %v1745
    %v1747 = vshll.u32 683565275, %v1744
    %v1748 = vshrl.u32 2475754826, %v1745
    %v1749 = vor.u32 %v1747, %v1748
    %v1750 = vshll.u32 2475754826, %v1744
    %v1751 = vshrl.u32 2131351028, %v1745
    %v1752 = vor.u32 %v1750, %v1751
    %v1753 = vshll.u32 2131351028, %v1744
    %v1754 = vshrl.u32 2102212464, %v1745
    %v1755 = vor.u32 %v1753, %v1754
    %v1756 = vshll.u32 2102212464, %v1744
    %v1757 = vshrl.u32 920167782, %v1745
    %v1758 = vor.u32 %v1756, %v1757
    %v1759 = vshll.u32 920167782, %v1744
    %v1760 = vshrl.u32 1326507024, %v1745
    %v1761 = vor.u32 %v1759, %v1760
    %vm1762 = vcmp.lt.s32.totalorder %v1743, 1
    %vm1763 = vcmp.lt.s32.totalorder %v1743, 2
    %vm1764 = vcmp.lt.s32.totalorder %v1743, 3
    %vm1765 = vcmp.lt.s32.totalorder %v1743, 4
    %v1766 = vsel %vm1762, %v1746, %v1749
    %v1767 = vsel %vm1765, %v1755, 2102212464
    %v1768 = vsel %vm1764, %v1752, %v1767
    %v1769 = vsel %vm1763, %v1766, %v1768
    %v1770 = vsel %vm1762, %v1749, %v1752
    %v1771 = vsel %vm1765, %v1758, 920167782
    %v1772 = vsel %vm1764, %v1755, %v1771
    %v1773 = vsel %vm1763, %v1770, %v1772
    %v1774 = vsel %vm1762, %v1752, %v1755
    %v1775 = vsel %vm1765, %v1761, 1326507024
    %v1776 = vsel %vm1764, %v1758, %v1775
    %v1777 = vsel %vm1763, %v1774, %v1776
    %v1778 = vshll.u32 %v1738, 8
    %v1779 = vmul.u32.u64.compose %v1778, %v1777
    %v1780 = vextract.low.u32 %v1779
    %v1781 = vextract.high.u32 %v1779
    %v1782 = vmul.u32.u64.compose %v1778, %v1773
    %v1783 = vextract.low.u32 %v1782
    %v1784 = vextract.high.u32 %v1782
    %v1785 = vmul.u32 %v1778, %v1769
    %v1786 = vadd.s32 %v1781, %v1783
    %vm1787 = vc.u32 %v1781, %v1783
    %v1788 = vadd.s32 %v1784, 1
    %v1789 = vsel %vm1787, %v1788, %v1784
    %v1790 = vadd.s32 %v1785, %v1789
    %v1791 = vadd.s32 %v1790, 536870912
    %v1792 = vshrl.u32 %v1791, 30
    %v1793 = vshll.u32 %v1792, 30
    %v1794 = vsub.s32 %v1790, %v1793
    %vm1795 = vcmp.lt.s32.totalorder %v1794, 0
    %v1796 = vsub.s32 0, %v1794
    %v1797 = vsel %vm1795, %v1796, %v1794
    %v1798 = vclz %v1797
    %v1799 = vsub.s32 %v1798, 2
    %vm1800 = vcmp.gt.s32.totalorder 0, %v1799
    %v1801 = vsel %vm1800, 0, %v1799
    %v1802 = vsub.s32 32, %v1801
    %v1803 = vshll.u32 %v1794, %v1801
    %v1804 = vshrl.u32 %v1786, %v1802
    %v1805 = vor.u32 %v1803, %v1804
    %v1806 = vsub.s32 4294967266, %v1801
    %v1807 = vadd.s32 %v1806, 127
    %v1808 = vshll.u32 %v1807, 23
    %v1809 = vor.u32 4788187, %v1808
    %v1810 = vand.u32 2147483647, %v1809
    %v1812 = vcvt.s32.f32 %v1805
    %v1813 = vmul.f32 %v1812, %v1810
    %v1814 = vxor.u32 %v1813, 2147483648
    %v1815 = vsel %vm1732, %v1814, %v1813
    %v1816 = vsub.s32 4, %v1792
    %v1817 = vsel %vm1732, %v1816, %v1792
    %v1818 = vsel %vm1731, %v796, %v1815
    %v1819 = vsel %vm1731, 0, %v1817
    %v1820 = vcosq.f32.pop %v1818
    %v1821 = vsinq.f32.pop %v1818
    %vm1822 = vweird.f32 %v796
    %v1823 = vand.u32 %v1819, 3
    %vm1824 = vcmp.lt.s32.totalorder %v1823, 2
    %vm1825 = vcmp.eq.s32.totalorder %v1823, 0
    %v1826 = vxor.u32 %v1821, 2147483648
    %v1827 = vsel %vm1825, %v1820, %v1826
    %vm1828 = vcmp.eq.s32.totalorder %v1823, 2
    %v1829 = vxor.u32 %v1820, 2147483648
    %v1830 = vsel %vm1828, %v1829, %v1821
    %v1831 = vsel %vm1824, %v1827, %v1830
    %v1832 = vsel %vm1822, nan, %v1831
    %v1833 = vand.u32 2147483647, %v797
    %vm1834 = vcmp.le.f32.partialorder %v1833, 0.7853982
    %vm1835 = vcmp.lt.s32.totalorder %v797, 0
    %v1836 = vand.u32 %v797, 2139095040
    %v1837 = vshrl.u32 %v1836, 23
    %v1838 = vsub.s32 %v1837, 127
    %v1839 = vand.u32 2147483647, %v797
    %v1840 = vand.u32 %v1839, 8388607
    %v1841 = vor.u32 %v1840, 8388608
    %v1842 = vsub.s32 0, %v1841
    %v1843 = vadd.s32 %v1838, 1
    %vm1844 = vcmp.gt.s32.totalorder %v1843, 0
    %v1845 = vsel %vm1844, %v1843, 0
    %v1846 = vshrl.u32 %v1845, 5
    %v1847 = vand.u32 %v1845, 31
    %v1848 = vsub.s32 32, %v1847
    %v1849 = vshrl.u32 683565275, %v1848
    %v1850 = vshll.u32 683565275, %v1847
    %v1851 = vshrl.u32 2475754826, %v1848
    %v1852 = vor.u32 %v1850, %v1851
    %v1853 = vshll.u32 2475754826, %v1847
    %v1854 = vshrl.u32 2131351028, %v1848
    %v1855 = vor.u32 %v1853, %v1854
    %v1856 = vshll.u32 2131351028, %v1847
    %v1857 = vshrl.u32 2102212464, %v1848
    %v1858 = vor.u32 %v1856, %v1857
    %v1859 = vshll.u32 2102212464, %v1847
    %v1860 = vshrl.u32 920167782, %v1848
    %v1861 = vor.u32 %v1859, %v1860
    %v1862 = vshll.u32 920167782, %v1847
    %v1863 = vshrl.u32 1326507024, %v1848
    %v1864 = vor.u32 %v1862, %v1863
    %vm1865 = vcmp.lt.s32.totalorder %v1846, 1
    %vm1866 = vcmp.lt.s32.totalorder %v1846, 2
    %vm1867 = vcmp.lt.s32.totalorder %v1846, 3
    %vm1868 = vcmp.lt.s32.totalorder %v1846, 4
    %v1869 = vsel %vm1865, %v1849, %v1852
    %v1870 = vsel %vm1868, %v1858, 2102212464
    %v1871 = vsel %vm1867, %v1855, %v1870
    %v1872 = vsel %vm1866, %v1869, %v1871
    %v1873 = vsel %vm1865, %v1852, %v1855
    %v1874 = vsel %vm1868, %v1861, 920167782
    %v1875 = vsel %vm1867, %v1858, %v1874
    %v1876 = vsel %vm1866, %v1873, %v1875
    %v1877 = vsel %vm1865, %v1855, %v1858
    %v1878 = vsel %vm1868, %v1864, 1326507024
    %v1879 = vsel %vm1867, %v1861, %v1878
    %v1880 = vsel %vm1866, %v1877, %v1879
    %v1881 = vshll.u32 %v1841, 8
    %v1882 = vmul.u32.u64.compose %v1881, %v1880
    %v1883 = vextract.low.u32 %v1882
    %v1884 = vextract.high.u32 %v1882
    %v1885 = vmul.u32.u64.compose %v1881, %v1876
    %v1886 = vextract.low.u32 %v1885
    %v1887 = vextract.high.u32 %v1885
    %v1888 = vmul.u32 %v1881, %v1872
    %v1889 = vadd.s32 %v1884, %v1886
    %vm1890 = vc.u32 %v1884, %v1886
    %v1891 = vadd.s32 %v1887, 1
    %v1892 = vsel %vm1890, %v1891, %v1887
    %v1893 = vadd.s32 %v1888, %v1892
    %v1894 = vadd.s32 %v1893, 536870912
    %v1895 = vshrl.u32 %v1894, 30
    %v1896 = vshll.u32 %v1895, 30
    %v1897 = vsub.s32 %v1893, %v1896
    %vm1898 = vcmp.lt.s32.totalorder %v1897, 0
    %v1899 = vsub.s32 0, %v1897
    %v1900 = vsel %vm1898, %v1899, %v1897
    %v1901 = vclz %v1900
    %v1902 = vsub.s32 %v1901, 2
    %vm1903 = vcmp.gt.s32.totalorder 0, %v1902
    %v1904 = vsel %vm1903, 0, %v1902
    %v1905 = vsub.s32 32, %v1904
    %v1906 = vshll.u32 %v1897, %v1904
    %v1907 = vshrl.u32 %v1889, %v1905
    %v1908 = vor.u32 %v1906, %v1907
    %v1909 = vsub.s32 4294967266, %v1904
    %v1910 = vadd.s32 %v1909, 127
    %v1911 = vshll.u32 %v1910, 23
    %v1912 = vor.u32 4788187, %v1911
    %v1913 = vand.u32 2147483647, %v1912
    %v1915 = vcvt.s32.f32 %v1908
    %v1916 = vmul.f32 %v1915, %v1913
    %v1917 = vxor.u32 %v1916, 2147483648
    %v1918 = vsel %vm1835, %v1917, %v1916
    %v1919 = vsub.s32 4, %v1895
    %v1920 = vsel %vm1835, %v1919, %v1895
    %v1921 = vsel %vm1834, %v797, %v1918
    %v1922 = vsel %vm1834, 0, %v1920
    %v1923 = vcosq.f32.pop %v1921
    %v1924 = vsinq.f32.pop %v1921
    %vm1925 = vweird.f32 %v797
    %v1926 = vand.u32 %v1922, 3
    %vm1927 = vcmp.lt.s32.totalorder %v1926, 2
    %vm1928 = vcmp.eq.s32.totalorder %v1926, 0
    %v1929 = vxor.u32 %v1924, 2147483648
    %v1930 = vsel %vm1928, %v1923, %v1929
    %vm1931 = vcmp.eq.s32.totalorder %v1926, 2
    %v1932 = vxor.u32 %v1923, 2147483648
    %v1933 = vsel %vm1931, %v1932, %v1924
    %v1934 = vsel %vm1927, %v1930, %v1933
    %v1935 = vsel %vm1925, nan, %v1934
    %v1936 = vand.u32 2147483647, %v798
    %vm1937 = vcmp.le.f32.partialorder %v1936, 0.7853982
    %vm1938 = vcmp.lt.s32.totalorder %v798, 0
    %v1939 = vand.u32 %v798, 2139095040
    %v1940 = vshrl.u32 %v1939, 23
    %v1941 = vsub.s32 %v1940, 127
    %v1942 = vand.u32 2147483647, %v798
    %v1943 = vand.u32 %v1942, 8388607
    %v1944 = vor.u32 %v1943, 8388608
    %v1945 = vsub.s32 0, %v1944
    %v1946 = vadd.s32 %v1941, 1
    %vm1947 = vcmp.gt.s32.totalorder %v1946, 0
    %v1948 = vsel %vm1947, %v1946, 0
    %v1949 = vshrl.u32 %v1948, 5
    %v1950 = vand.u32 %v1948, 31
    %v1951 = vsub.s32 32, %v1950
    %v1952 = vshrl.u32 683565275, %v1951
    %v1953 = vshll.u32 683565275, %v1950
    %v1954 = vshrl.u32 2475754826, %v1951
    %v1955 = vor.u32 %v1953, %v1954
    %v1956 = vshll.u32 2475754826, %v1950
    %v1957 = vshrl.u32 2131351028, %v1951
    %v1958 = vor.u32 %v1956, %v1957
    %v1959 = vshll.u32 2131351028, %v1950
    %v1960 = vshrl.u32 2102212464, %v1951
    %v1961 = vor.u32 %v1959, %v1960
    %v1962 = vshll.u32 2102212464, %v1950
    %v1963 = vshrl.u32 920167782, %v1951
    %v1964 = vor.u32 %v1962, %v1963
    %v1965 = vshll.u32 920167782, %v1950
    %v1966 = vshrl.u32 1326507024, %v1951
    %v1967 = vor.u32 %v1965, %v1966
    %vm1968 = vcmp.lt.s32.totalorder %v1949, 1
    %vm1969 = vcmp.lt.s32.totalorder %v1949, 2
    %vm1970 = vcmp.lt.s32.totalorder %v1949, 3
    %vm1971 = vcmp.lt.s32.totalorder %v1949, 4
    %v1972 = vsel %vm1968, %v1952, %v1955
    %v1973 = vsel %vm1971, %v1961, 2102212464
    %v1974 = vsel %vm1970, %v1958, %v1973
    %v1975 = vsel %vm1969, %v1972, %v1974
    %v1976 = vsel %vm1968, %v1955, %v1958
    %v1977 = vsel %vm1971, %v1964, 920167782
    %v1978 = vsel %vm1970, %v1961, %v1977
    %v1979 = vsel %vm1969, %v1976, %v1978
    %v1980 = vsel %vm1968, %v1958, %v1961
    %v1981 = vsel %vm1971, %v1967, 1326507024
    %v1982 = vsel %vm1970, %v1964, %v1981
    %v1983 = vsel %vm1969, %v1980, %v1982
    %v1984 = vshll.u32 %v1944, 8
    %v1985 = vmul.u32.u64.compose %v1984, %v1983
    %v1986 = vextract.low.u32 %v1985
    %v1987 = vextract.high.u32 %v1985
    %v1988 = vmul.u32.u64.compose %v1984, %v1979
    %v1989 = vextract.low.u32 %v1988
    %v1990 = vextract.high.u32 %v1988
    %v1991 = vmul.u32 %v1984, %v1975
    %v1992 = vadd.s32 %v1987, %v1989
    %vm1993 = vc.u32 %v1987, %v1989
    %v1994 = vadd.s32 %v1990, 1
    %v1995 = vsel %vm1993, %v1994, %v1990
    %v1996 = vadd.s32 %v1991, %v1995
    %v1997 = vadd.s32 %v1996, 536870912
    %v1998 = vshrl.u32 %v1997, 30
    %v1999 = vshll.u32 %v1998, 30
    %v2000 = vsub.s32 %v1996, %v1999
    %vm2001 = vcmp.lt.s32.totalorder %v2000, 0
    %v2002 = vsub.s32 0, %v2000
    %v2003 = vsel %vm2001, %v2002, %v2000
    %v2004 = vclz %v2003
    %v2005 = vsub.s32 %v2004, 2
    %vm2006 = vcmp.gt.s32.totalorder 0, %v2005
    %v2007 = vsel %vm2006, 0, %v2005
    %v2008 = vsub.s32 32, %v2007
    %v2009 = vshll.u32 %v2000, %v2007
    %v2010 = vshrl.u32 %v1992, %v2008
    %v2011 = vor.u32 %v2009, %v2010
    %v2012 = vsub.s32 4294967266, %v2007
    %v2013 = vadd.s32 %v2012, 127
    %v2014 = vshll.u32 %v2013, 23
    %v2015 = vor.u32 4788187, %v2014
    %v2016 = vand.u32 2147483647, %v2015
    %v2018 = vcvt.s32.f32 %v2011
    %v2019 = vmul.f32 %v2018, %v2016
    %v2020 = vxor.u32 %v2019, 2147483648
    %v2021 = vsel %vm1938, %v2020, %v2019
    %v2022 = vsub.s32 4, %v1998
    %v2023 = vsel %vm1938, %v2022, %v1998
    %v2024 = vsel %vm1937, %v798, %v2021
    %v2025 = vsel %vm1937, 0, %v2023
    %v2026 = vcosq.f32.pop %v2024
    %v2027 = vsinq.f32.pop %v2024
    %vm2028 = vweird.f32 %v798
    %v2029 = vand.u32 %v2025, 3
    %vm2030 = vcmp.lt.s32.totalorder %v2029, 2
    %vm2031 = vcmp.eq.s32.totalorder %v2029, 0
    %v2032 = vxor.u32 %v2027, 2147483648
    %v2033 = vsel %vm2031, %v2026, %v2032
    %vm2034 = vcmp.eq.s32.totalorder %v2029, 2
    %v2035 = vxor.u32 %v2026, 2147483648
    %v2036 = vsel %vm2034, %v2035, %v2027
    %v2037 = vsel %vm2030, %v2033, %v2036
    %v2038 = vsel %vm2028, nan, %v2037
    %v2039 = vand.u32 2147483647, %v799
    %vm2040 = vcmp.le.f32.partialorder %v2039, 0.7853982
    %vm2041 = vcmp.lt.s32.totalorder %v799, 0
    %v2042 = vand.u32 %v799, 2139095040
    %v2043 = vshrl.u32 %v2042, 23
    %v2044 = vsub.s32 %v2043, 127
    %v2045 = vand.u32 2147483647, %v799
    %v2046 = vand.u32 %v2045, 8388607
    %v2047 = vor.u32 %v2046, 8388608
    %v2048 = vsub.s32 0, %v2047
    %v2049 = vadd.s32 %v2044, 1
    %vm2050 = vcmp.gt.s32.totalorder %v2049, 0
    %v2051 = vsel %vm2050, %v2049, 0
    %v2052 = vshrl.u32 %v2051, 5
    %v2053 = vand.u32 %v2051, 31
    %v2054 = vsub.s32 32, %v2053
    %v2055 = vshrl.u32 683565275, %v2054
    %v2056 = vshll.u32 683565275, %v2053
    %v2057 = vshrl.u32 2475754826, %v2054
    %v2058 = vor.u32 %v2056, %v2057
    %v2059 = vshll.u32 2475754826, %v2053
    %v2060 = vshrl.u32 2131351028, %v2054
    %v2061 = vor.u32 %v2059, %v2060
    %v2062 = vshll.u32 2131351028, %v2053
    %v2063 = vshrl.u32 2102212464, %v2054
    %v2064 = vor.u32 %v2062, %v2063
    %v2065 = vshll.u32 2102212464, %v2053
    %v2066 = vshrl.u32 920167782, %v2054
    %v2067 = vor.u32 %v2065, %v2066
    %v2068 = vshll.u32 920167782, %v2053
    %v2069 = vshrl.u32 1326507024, %v2054
    %v2070 = vor.u32 %v2068, %v2069
    %vm2071 = vcmp.lt.s32.totalorder %v2052, 1
    %vm2072 = vcmp.lt.s32.totalorder %v2052, 2
    %vm2073 = vcmp.lt.s32.totalorder %v2052, 3
    %vm2074 = vcmp.lt.s32.totalorder %v2052, 4
    %v2075 = vsel %vm2071, %v2055, %v2058
    %v2076 = vsel %vm2074, %v2064, 2102212464
    %v2077 = vsel %vm2073, %v2061, %v2076
    %v2078 = vsel %vm2072, %v2075, %v2077
    %v2079 = vsel %vm2071, %v2058, %v2061
    %v2080 = vsel %vm2074, %v2067, 920167782
    %v2081 = vsel %vm2073, %v2064, %v2080
    %v2082 = vsel %vm2072, %v2079, %v2081
    %v2083 = vsel %vm2071, %v2061, %v2064
    %v2084 = vsel %vm2074, %v2070, 1326507024
    %v2085 = vsel %vm2073, %v2067, %v2084
    %v2086 = vsel %vm2072, %v2083, %v2085
    %v2087 = vshll.u32 %v2047, 8
    %v2088 = vmul.u32.u64.compose %v2087, %v2086
    %v2089 = vextract.low.u32 %v2088
    %v2090 = vextract.high.u32 %v2088
    %v2091 = vmul.u32.u64.compose %v2087, %v2082
    %v2092 = vextract.low.u32 %v2091
    %v2093 = vextract.high.u32 %v2091
    %v2094 = vmul.u32 %v2087, %v2078
    %v2095 = vadd.s32 %v2090, %v2092
    %vm2096 = vc.u32 %v2090, %v2092
    %v2097 = vadd.s32 %v2093, 1
    %v2098 = vsel %vm2096, %v2097, %v2093
    %v2099 = vadd.s32 %v2094, %v2098
    %v2100 = vadd.s32 %v2099, 536870912
    %v2101 = vshrl.u32 %v2100, 30
    %v2102 = vshll.u32 %v2101, 30
    %v2103 = vsub.s32 %v2099, %v2102
    %vm2104 = vcmp.lt.s32.totalorder %v2103, 0
    %v2105 = vsub.s32 0, %v2103
    %v2106 = vsel %vm2104, %v2105, %v2103
    %v2107 = vclz %v2106
    %v2108 = vsub.s32 %v2107, 2
    %vm2109 = vcmp.gt.s32.totalorder 0, %v2108
    %v2110 = vsel %vm2109, 0, %v2108
    %v2111 = vsub.s32 32, %v2110
    %v2112 = vshll.u32 %v2103, %v2110
    %v2113 = vshrl.u32 %v2095, %v2111
    %v2114 = vor.u32 %v2112, %v2113
    %v2115 = vsub.s32 4294967266, %v2110
    %v2116 = vadd.s32 %v2115, 127
    %v2117 = vshll.u32 %v2116, 23
    %v2118 = vor.u32 4788187, %v2117
    %v2119 = vand.u32 2147483647, %v2118
    %v2121 = vcvt.s32.f32 %v2114
    %v2122 = vmul.f32 %v2121, %v2119
    %v2123 = vxor.u32 %v2122, 2147483648
    %v2124 = vsel %vm2041, %v2123, %v2122
    %v2125 = vsub.s32 4, %v2101
    %v2126 = vsel %vm2041, %v2125, %v2101
    %v2127 = vsel %vm2040, %v799, %v2124
    %v2128 = vsel %vm2040, 0, %v2126
    %v2129 = vcosq.f32.pop %v2127
    %v2130 = vsinq.f32.pop %v2127
    %vm2131 = vweird.f32 %v799
    %v2132 = vand.u32 %v2128, 3
    %vm2133 = vcmp.lt.s32.totalorder %v2132, 2
    %vm2134 = vcmp.eq.s32.totalorder %v2132, 0
    %v2135 = vxor.u32 %v2130, 2147483648
    %v2136 = vsel %vm2134, %v2129, %v2135
    %vm2137 = vcmp.eq.s32.totalorder %v2132, 2
    %v2138 = vxor.u32 %v2129, 2147483648
    %v2139 = vsel %vm2137, %v2138, %v2130
    %v2140 = vsel %vm2133, %v2136, %v2139
    %v2141 = vsel %vm2131, nan, %v2140
    %v2142 = vand.u32 2147483647, %v800
    %vm2143 = vcmp.le.f32.partialorder %v2142, 0.7853982
    %vm2144 = vcmp.lt.s32.totalorder %v800, 0
    %v2145 = vand.u32 %v800, 2139095040
    %v2146 = vshrl.u32 %v2145, 23
    %v2147 = vsub.s32 %v2146, 127
    %v2148 = vand.u32 2147483647, %v800
    %v2149 = vand.u32 %v2148, 8388607
    %v2150 = vor.u32 %v2149, 8388608
    %v2151 = vsub.s32 0, %v2150
    %v2152 = vadd.s32 %v2147, 1
    %vm2153 = vcmp.gt.s32.totalorder %v2152, 0
    %v2154 = vsel %vm2153, %v2152, 0
    %v2155 = vshrl.u32 %v2154, 5
    %v2156 = vand.u32 %v2154, 31
    %v2157 = vsub.s32 32, %v2156
    %v2158 = vshrl.u32 683565275, %v2157
    %v2159 = vshll.u32 683565275, %v2156
    %v2160 = vshrl.u32 2475754826, %v2157
    %v2161 = vor.u32 %v2159, %v2160
    %v2162 = vshll.u32 2475754826, %v2156
    %v2163 = vshrl.u32 2131351028, %v2157
    %v2164 = vor.u32 %v2162, %v2163
    %v2165 = vshll.u32 2131351028, %v2156
    %v2166 = vshrl.u32 2102212464, %v2157
    %v2167 = vor.u32 %v2165, %v2166
    %v2168 = vshll.u32 2102212464, %v2156
    %v2169 = vshrl.u32 920167782, %v2157
    %v2170 = vor.u32 %v2168, %v2169
    %v2171 = vshll.u32 920167782, %v2156
    %v2172 = vshrl.u32 1326507024, %v2157
    %v2173 = vor.u32 %v2171, %v2172
    %vm2174 = vcmp.lt.s32.totalorder %v2155, 1
    %vm2175 = vcmp.lt.s32.totalorder %v2155, 2
    %vm2176 = vcmp.lt.s32.totalorder %v2155, 3
    %vm2177 = vcmp.lt.s32.totalorder %v2155, 4
    %v2178 = vsel %vm2174, %v2158, %v2161
    %v2179 = vsel %vm2177, %v2167, 2102212464
    %v2180 = vsel %vm2176, %v2164, %v2179
    %v2181 = vsel %vm2175, %v2178, %v2180
    %v2182 = vsel %vm2174, %v2161, %v2164
    %v2183 = vsel %vm2177, %v2170, 920167782
    %v2184 = vsel %vm2176, %v2167, %v2183
    %v2185 = vsel %vm2175, %v2182, %v2184
    %v2186 = vsel %vm2174, %v2164, %v2167
    %v2187 = vsel %vm2177, %v2173, 1326507024
    %v2188 = vsel %vm2176, %v2170, %v2187
    %v2189 = vsel %vm2175, %v2186, %v2188
    %v2190 = vshll.u32 %v2150, 8
    %v2191 = vmul.u32.u64.compose %v2190, %v2189
    %v2192 = vextract.low.u32 %v2191
    %v2193 = vextract.high.u32 %v2191
    %v2194 = vmul.u32.u64.compose %v2190, %v2185
    %v2195 = vextract.low.u32 %v2194
    %v2196 = vextract.high.u32 %v2194
    %v2197 = vmul.u32 %v2190, %v2181
    %v2198 = vadd.s32 %v2193, %v2195
    %vm2199 = vc.u32 %v2193, %v2195
    %v2200 = vadd.s32 %v2196, 1
    %v2201 = vsel %vm2199, %v2200, %v2196
    %v2202 = vadd.s32 %v2197, %v2201
    %v2203 = vadd.s32 %v2202, 536870912
    %v2204 = vshrl.u32 %v2203, 30
    %v2205 = vshll.u32 %v2204, 30
    %v2206 = vsub.s32 %v2202, %v2205
    %vm2207 = vcmp.lt.s32.totalorder %v2206, 0
    %v2208 = vsub.s32 0, %v2206
    %v2209 = vsel %vm2207, %v2208, %v2206
    %v2210 = vclz %v2209
    %v2211 = vsub.s32 %v2210, 2
    %vm2212 = vcmp.gt.s32.totalorder 0, %v2211
    %v2213 = vsel %vm2212, 0, %v2211
    %v2214 = vsub.s32 32, %v2213
    %v2215 = vshll.u32 %v2206, %v2213
    %v2216 = vshrl.u32 %v2198, %v2214
    %v2217 = vor.u32 %v2215, %v2216
    %v2218 = vsub.s32 4294967266, %v2213
    %v2219 = vadd.s32 %v2218, 127
    %v2220 = vshll.u32 %v2219, 23
    %v2221 = vor.u32 4788187, %v2220
    %v2222 = vand.u32 2147483647, %v2221
    %v2224 = vcvt.s32.f32 %v2217
    %v2225 = vmul.f32 %v2224, %v2222
    %v2226 = vxor.u32 %v2225, 2147483648
    %v2227 = vsel %vm2144, %v2226, %v2225
    %v2228 = vsub.s32 4, %v2204
    %v2229 = vsel %vm2144, %v2228, %v2204
    %v2230 = vsel %vm2143, %v800, %v2227
    %v2231 = vsel %vm2143, 0, %v2229
    %v2232 = vcosq.f32.pop %v2230
    %v2233 = vsinq.f32.pop %v2230
    %vm2234 = vweird.f32 %v800
    %v2235 = vand.u32 %v2231, 3
    %vm2236 = vcmp.lt.s32.totalorder %v2235, 2
    %vm2237 = vcmp.eq.s32.totalorder %v2235, 0
    %v2238 = vxor.u32 %v2233, 2147483648
    %v2239 = vsel %vm2237, %v2232, %v2238
    %vm2240 = vcmp.eq.s32.totalorder %v2235, 2
    %v2241 = vxor.u32 %v2232, 2147483648
    %v2242 = vsel %vm2240, %v2241, %v2233
    %v2243 = vsel %vm2236, %v2239, %v2242
    %v2244 = vsel %vm2234, nan, %v2243
    %v2245 = vand.u32 2147483647, %v801
    %vm2246 = vcmp.le.f32.partialorder %v2245, 0.7853982
    %vm2247 = vcmp.lt.s32.totalorder %v801, 0
    %v2248 = vand.u32 %v801, 2139095040
    %v2249 = vshrl.u32 %v2248, 23
    %v2250 = vsub.s32 %v2249, 127
    %v2251 = vand.u32 2147483647, %v801
    %v2252 = vand.u32 %v2251, 8388607
    %v2253 = vor.u32 %v2252, 8388608
    %v2254 = vsub.s32 0, %v2253
    %v2255 = vadd.s32 %v2250, 1
    %vm2256 = vcmp.gt.s32.totalorder %v2255, 0
    %v2257 = vsel %vm2256, %v2255, 0
    %v2258 = vshrl.u32 %v2257, 5
    %v2259 = vand.u32 %v2257, 31
    %v2260 = vsub.s32 32, %v2259
    %v2261 = vshrl.u32 683565275, %v2260
    %v2262 = vshll.u32 683565275, %v2259
    %v2263 = vshrl.u32 2475754826, %v2260
    %v2264 = vor.u32 %v2262, %v2263
    %v2265 = vshll.u32 2475754826, %v2259
    %v2266 = vshrl.u32 2131351028, %v2260
    %v2267 = vor.u32 %v2265, %v2266
    %v2268 = vshll.u32 2131351028, %v2259
    %v2269 = vshrl.u32 2102212464, %v2260
    %v2270 = vor.u32 %v2268, %v2269
    %v2271 = vshll.u32 2102212464, %v2259
    %v2272 = vshrl.u32 920167782, %v2260
    %v2273 = vor.u32 %v2271, %v2272
    %v2274 = vshll.u32 920167782, %v2259
    %v2275 = vshrl.u32 1326507024, %v2260
    %v2276 = vor.u32 %v2274, %v2275
    %vm2277 = vcmp.lt.s32.totalorder %v2258, 1
    %vm2278 = vcmp.lt.s32.totalorder %v2258, 2
    %vm2279 = vcmp.lt.s32.totalorder %v2258, 3
    %vm2280 = vcmp.lt.s32.totalorder %v2258, 4
    %v2281 = vsel %vm2277, %v2261, %v2264
    %v2282 = vsel %vm2280, %v2270, 2102212464
    %v2283 = vsel %vm2279, %v2267, %v2282
    %v2284 = vsel %vm2278, %v2281, %v2283
    %v2285 = vsel %vm2277, %v2264, %v2267
    %v2286 = vsel %vm2280, %v2273, 920167782
    %v2287 = vsel %vm2279, %v2270, %v2286
    %v2288 = vsel %vm2278, %v2285, %v2287
    %v2289 = vsel %vm2277, %v2267, %v2270
    %v2290 = vsel %vm2280, %v2276, 1326507024
    %v2291 = vsel %vm2279, %v2273, %v2290
    %v2292 = vsel %vm2278, %v2289, %v2291
    %v2293 = vshll.u32 %v2253, 8
    %v2294 = vmul.u32.u64.compose %v2293, %v2292
    %v2295 = vextract.low.u32 %v2294
    %v2296 = vextract.high.u32 %v2294
    %v2297 = vmul.u32.u64.compose %v2293, %v2288
    %v2298 = vextract.low.u32 %v2297
    %v2299 = vextract.high.u32 %v2297
    %v2300 = vmul.u32 %v2293, %v2284
    %v2301 = vadd.s32 %v2296, %v2298
    %vm2302 = vc.u32 %v2296, %v2298
    %v2303 = vadd.s32 %v2299, 1
    %v2304 = vsel %vm2302, %v2303, %v2299
    %v2305 = vadd.s32 %v2300, %v2304
    %v2306 = vadd.s32 %v2305, 536870912
    %v2307 = vshrl.u32 %v2306, 30
    %v2308 = vshll.u32 %v2307, 30
    %v2309 = vsub.s32 %v2305, %v2308
    %vm2310 = vcmp.lt.s32.totalorder %v2309, 0
    %v2311 = vsub.s32 0, %v2309
    %v2312 = vsel %vm2310, %v2311, %v2309
    %v2313 = vclz %v2312
    %v2314 = vsub.s32 %v2313, 2
    %vm2315 = vcmp.gt.s32.totalorder 0, %v2314
    %v2316 = vsel %vm2315, 0, %v2314
    %v2317 = vsub.s32 32, %v2316
    %v2318 = vshll.u32 %v2309, %v2316
    %v2319 = vshrl.u32 %v2301, %v2317
    %v2320 = vor.u32 %v2318, %v2319
    %v2321 = vsub.s32 4294967266, %v2316
    %v2322 = vadd.s32 %v2321, 127
    %v2323 = vshll.u32 %v2322, 23
    %v2324 = vor.u32 4788187, %v2323
    %v2325 = vand.u32 2147483647, %v2324
    %v2327 = vcvt.s32.f32 %v2320
    %v2328 = vmul.f32 %v2327, %v2325
    %v2329 = vxor.u32 %v2328, 2147483648
    %v2330 = vsel %vm2247, %v2329, %v2328
    %v2331 = vsub.s32 4, %v2307
    %v2332 = vsel %vm2247, %v2331, %v2307
    %v2333 = vsel %vm2246, %v801, %v2330
    %v2334 = vsel %vm2246, 0, %v2332
    %v2335 = vcosq.f32.pop %v2333
    %v2336 = vsinq.f32.pop %v2333
    %vm2337 = vweird.f32 %v801
    %v2338 = vand.u32 %v2334, 3
    %vm2339 = vcmp.lt.s32.totalorder %v2338, 2
    %vm2340 = vcmp.eq.s32.totalorder %v2338, 0
    %v2341 = vxor.u32 %v2336, 2147483648
    %v2342 = vsel %vm2340, %v2335, %v2341
    %vm2343 = vcmp.eq.s32.totalorder %v2338, 2
    %v2344 = vxor.u32 %v2335, 2147483648
    %v2345 = vsel %vm2343, %v2344, %v2336
    %v2346 = vsel %vm2339, %v2342, %v2345
    %v2347 = vsel %vm2337, nan, %v2346
    %v2348 = vand.u32 2147483647, %v802
    %vm2349 = vcmp.le.f32.partialorder %v2348, 0.7853982
    %vm2350 = vcmp.lt.s32.totalorder %v802, 0
    %v2351 = vand.u32 %v802, 2139095040
    %v2352 = vshrl.u32 %v2351, 23
    %v2353 = vsub.s32 %v2352, 127
    %v2354 = vand.u32 2147483647, %v802
    %v2355 = vand.u32 %v2354, 8388607
    %v2356 = vor.u32 %v2355, 8388608
    %v2357 = vsub.s32 0, %v2356
    %v2358 = vadd.s32 %v2353, 1
    %vm2359 = vcmp.gt.s32.totalorder %v2358, 0
    %v2360 = vsel %vm2359, %v2358, 0
    %v2361 = vshrl.u32 %v2360, 5
    %v2362 = vand.u32 %v2360, 31
    %v2363 = vsub.s32 32, %v2362
    %v2364 = vshrl.u32 683565275, %v2363
    %v2365 = vshll.u32 683565275, %v2362
    %v2366 = vshrl.u32 2475754826, %v2363
    %v2367 = vor.u32 %v2365, %v2366
    %v2368 = vshll.u32 2475754826, %v2362
    %v2369 = vshrl.u32 2131351028, %v2363
    %v2370 = vor.u32 %v2368, %v2369
    %v2371 = vshll.u32 2131351028, %v2362
    %v2372 = vshrl.u32 2102212464, %v2363
    %v2373 = vor.u32 %v2371, %v2372
    %v2374 = vshll.u32 2102212464, %v2362
    %v2375 = vshrl.u32 920167782, %v2363
    %v2376 = vor.u32 %v2374, %v2375
    %v2377 = vshll.u32 920167782, %v2362
    %v2378 = vshrl.u32 1326507024, %v2363
    %v2379 = vor.u32 %v2377, %v2378
    %vm2380 = vcmp.lt.s32.totalorder %v2361, 1
    %vm2381 = vcmp.lt.s32.totalorder %v2361, 2
    %vm2382 = vcmp.lt.s32.totalorder %v2361, 3
    %vm2383 = vcmp.lt.s32.totalorder %v2361, 4
    %v2384 = vsel %vm2380, %v2364, %v2367
    %v2385 = vsel %vm2383, %v2373, 2102212464
    %v2386 = vsel %vm2382, %v2370, %v2385
    %v2387 = vsel %vm2381, %v2384, %v2386
    %v2388 = vsel %vm2380, %v2367, %v2370
    %v2389 = vsel %vm2383, %v2376, 920167782
    %v2390 = vsel %vm2382, %v2373, %v2389
    %v2391 = vsel %vm2381, %v2388, %v2390
    %v2392 = vsel %vm2380, %v2370, %v2373
    %v2393 = vsel %vm2383, %v2379, 1326507024
    %v2394 = vsel %vm2382, %v2376, %v2393
    %v2395 = vsel %vm2381, %v2392, %v2394
    %v2396 = vshll.u32 %v2356, 8
    %v2397 = vmul.u32.u64.compose %v2396, %v2395
    %v2398 = vextract.low.u32 %v2397
    %v2399 = vextract.high.u32 %v2397
    %v2400 = vmul.u32.u64.compose %v2396, %v2391
    %v2401 = vextract.low.u32 %v2400
    %v2402 = vextract.high.u32 %v2400
    %v2403 = vmul.u32 %v2396, %v2387
    %v2404 = vadd.s32 %v2399, %v2401
    %vm2405 = vc.u32 %v2399, %v2401
    %v2406 = vadd.s32 %v2402, 1
    %v2407 = vsel %vm2405, %v2406, %v2402
    %v2408 = vadd.s32 %v2403, %v2407
    %v2409 = vadd.s32 %v2408, 536870912
    %v2410 = vshrl.u32 %v2409, 30
    %v2411 = vshll.u32 %v2410, 30
    %v2412 = vsub.s32 %v2408, %v2411
    %vm2413 = vcmp.lt.s32.totalorder %v2412, 0
    %v2414 = vsub.s32 0, %v2412
    %v2415 = vsel %vm2413, %v2414, %v2412
    %v2416 = vclz %v2415
    %v2417 = vsub.s32 %v2416, 2
    %vm2418 = vcmp.gt.s32.totalorder 0, %v2417
    %v2419 = vsel %vm2418, 0, %v2417
    %v2420 = vsub.s32 32, %v2419
    %v2421 = vshll.u32 %v2412, %v2419
    %v2422 = vshrl.u32 %v2404, %v2420
    %v2423 = vor.u32 %v2421, %v2422
    %v2424 = vsub.s32 4294967266, %v2419
    %v2425 = vadd.s32 %v2424, 127
    %v2426 = vshll.u32 %v2425, 23
    %v2427 = vor.u32 4788187, %v2426
    %v2428 = vand.u32 2147483647, %v2427
    %v2430 = vcvt.s32.f32 %v2423
    %v2431 = vmul.f32 %v2430, %v2428
    %v2432 = vxor.u32 %v2431, 2147483648
    %v2433 = vsel %vm2350, %v2432, %v2431
    %v2434 = vsub.s32 4, %v2410
    %v2435 = vsel %vm2350, %v2434, %v2410
    %v2436 = vsel %vm2349, %v802, %v2433
    %v2437 = vsel %vm2349, 0, %v2435
    %v2438 = vcosq.f32.pop %v2436
    %v2439 = vsinq.f32.pop %v2436
    %vm2440 = vweird.f32 %v802
    %v2441 = vand.u32 %v2437, 3
    %vm2442 = vcmp.lt.s32.totalorder %v2441, 2
    %vm2443 = vcmp.eq.s32.totalorder %v2441, 0
    %v2444 = vxor.u32 %v2439, 2147483648
    %v2445 = vsel %vm2443, %v2438, %v2444
    %vm2446 = vcmp.eq.s32.totalorder %v2441, 2
    %v2447 = vxor.u32 %v2438, 2147483648
    %v2448 = vsel %vm2446, %v2447, %v2439
    %v2449 = vsel %vm2442, %v2445, %v2448
    %v2450 = vsel %vm2440, nan, %v2449
    %v2451 = vmul.f32 %v681, %v905
    %v2452 = vmul.f32 %v688, %v1008
    %v2453 = vmul.f32 %v695, %v1111
    %v2454 = vmul.f32 %v702, %v1214
    %v2455 = vmul.f32 %v709, %v1317
    %v2456 = vmul.f32 %v716, %v1420
    %v2457 = vmul.f32 %v723, %v1523
    %v2458 = vmul.f32 %v730, %v1626
    %v2459 = vmul.f32 %v737, %v1729
    %v2460 = vmul.f32 %v744, %v1832
    %v2461 = vmul.f32 %v751, %v1935
    %v2462 = vmul.f32 %v758, %v2038
    %v2463 = vmul.f32 %v765, %v2141
    %v2464 = vmul.f32 %v772, %v2244
    %v2465 = vmul.f32 %v779, %v2347
    %v2466 = vmul.f32 %v786, %v2450
    %v2467 = vld [vmem:[#allocation3] sm:$0xff]
    %v2468 = vld [vmem:[#allocation3 + $0x8] sm:$0xff]
    %v2469 = vmul.f32 %v2451, 0.5
    %v2470 = vmul.f32 %v2452, 0.5
    %v2471 = vmul.f32 %v2453, 0.5
    %v2472 = vmul.f32 %v2454, 0.5
    %v2473 = vmul.f32 %v2455, 0.5
    %v2474 = vmul.f32 %v2456, 0.5
    %v2475 = vmul.f32 %v2457, 0.5
    %v2476 = vmul.f32 %v2458, 0.5
    %v2477 = vmul.f32 %v2459, 0.5
    %v2478 = vmul.f32 %v2460, 0.5
    %v2479 = vmul.f32 %v2461, 0.5
    %v2480 = vmul.f32 %v2462, 0.5
    %v2481 = vmul.f32 %v2463, 0.5
    %v2482 = vmul.f32 %v2464, 0.5
    %v2483 = vmul.f32 %v2465, 0.5
    %v2484 = vmul.f32 %v2466, 0.5
    %v2501 = vcombine.low %v2469, %v2470
    %v2502 = vcombine.low %v2471, %v2472
    %v2503 = vcombine.low %v2473, %v2474
    %v2504 = vcombine.low %v2475, %v2476
    %v2506 = vunpack.c.l.s4 1966171168
    %v2507 = vunpack.c.0.s8 %v2506
    %v2508 = vlaneseq
    %v2509 = vshrl.u32 %v2508, 7
    %v2510 = vsub.s32 %v2507, %v2509
    %v2511 = vrot.slane %v2501, %v2510
    %v2513 = vunpack.c.l.s4 1966171168
    %v2514 = vunpack.c.0.s8 %v2513
    %v2515 = vlaneseq
    %v2516 = vshrl.u32 %v2515, 7
    %v2517 = vsub.s32 %v2514, %v2516
    %v2518 = vrot.slane %v2502, %v2517
    %v2520 = vunpack.c.l.s4 1966171168
    %v2521 = vunpack.c.0.s8 %v2520
    %v2522 = vlaneseq
    %v2523 = vshrl.u32 %v2522, 7
    %v2524 = vsub.s32 %v2521, %v2523
    %v2525 = vrot.slane %v2503, %v2524
    %v2527 = vunpack.c.l.s4 1966171168
    %v2528 = vunpack.c.0.s8 %v2527
    %v2529 = vlaneseq
    %v2530 = vshrl.u32 %v2529, 7
    %v2531 = vsub.s32 %v2528, %v2530
    %v2532 = vrot.slane %v2504, %v2531
    %v2533 = vcombine.low %v2511, %v2518
    %v2534 = vcombine.low %v2525, %v2532
    %v2536 = vunpack.c.l.s4 1966171168
    %v2537 = vunpack.c.0.s8 %v2536
    %v2538 = vlaneseq
    %v2539 = vshrl.u32 %v2538, 7
    %v2540 = vsub.s32 %v2537, %v2539
    %v2541 = vrot.slane %v2533, %v2540
    %v2543 = vunpack.c.l.s4 1966171168
    %v2544 = vunpack.c.0.s8 %v2543
    %v2545 = vlaneseq
    %v2546 = vshrl.u32 %v2545, 7
    %v2547 = vsub.s32 %v2544, %v2546
    %v2548 = vrot.slane %v2534, %v2547
    %v2549 = vcombine.low %v2541, %v2548
    %v2550 = vcombine.low %v2477, %v2478
    %v2551 = vcombine.low %v2479, %v2480
    %v2552 = vcombine.low %v2481, %v2482
    %v2553 = vcombine.low %v2483, %v2484
    %v2555 = vunpack.c.l.s4 1966171168
    %v2556 = vunpack.c.0.s8 %v2555
    %v2557 = vlaneseq
    %v2558 = vshrl.u32 %v2557, 7
    %v2559 = vsub.s32 %v2556, %v2558
    %v2560 = vrot.slane %v2550, %v2559
    %v2562 = vunpack.c.l.s4 1966171168
    %v2563 = vunpack.c.0.s8 %v2562
    %v2564 = vlaneseq
    %v2565 = vshrl.u32 %v2564, 7
    %v2566 = vsub.s32 %v2563, %v2565
    %v2567 = vrot.slane %v2551, %v2566
    %v2569 = vunpack.c.l.s4 1966171168
    %v2570 = vunpack.c.0.s8 %v2569
    %v2571 = vlaneseq
    %v2572 = vshrl.u32 %v2571, 7
    %v2573 = vsub.s32 %v2570, %v2572
    %v2574 = vrot.slane %v2552, %v2573
    %v2576 = vunpack.c.l.s4 1966171168
    %v2577 = vunpack.c.0.s8 %v2576
    %v2578 = vlaneseq
    %v2579 = vshrl.u32 %v2578, 7
    %v2580 = vsub.s32 %v2577, %v2579
    %v2581 = vrot.slane %v2553, %v2580
    %v2582 = vcombine.low %v2560, %v2567
    %v2583 = vcombine.low %v2574, %v2581
    %v2585 = vunpack.c.l.s4 1966171168
    %v2586 = vunpack.c.0.s8 %v2585
    %v2587 = vlaneseq
    %v2588 = vshrl.u32 %v2587, 7
    %v2589 = vsub.s32 %v2586, %v2588
    %v2590 = vrot.slane %v2582, %v2589
    %v2592 = vunpack.c.l.s4 1966171168
    %v2593 = vunpack.c.0.s8 %v2592
    %v2594 = vlaneseq
    %v2595 = vshrl.u32 %v2594, 7
    %v2596 = vsub.s32 %v2593, %v2595
    %v2597 = vrot.slane %v2583, %v2596
    %v2598 = vcombine.low %v2590, %v2597
    %v2601 = vadd.f32 %v2467, %v2549
    %v2602 = vadd.f32 %v2468, %v2598
    %2603 = vst [vmem:[#allocation6] sm:$0xff] %v2601
    %2604 = vst [vmem:[#allocation6 + $0x8] sm:$0xff] %v2602
    // Predicated region
    $region14: #{tpu_custom_call.1} parent=1 // pred_check
      _
    $region15: #{tpu_custom_call.1} parent=1 // pred_check_branch
      %2606 = sbr.rel (0) target = $region17
    $region16: #{tpu_custom_call.1} parent=1 // pred_region
      %s2608 = ssub.s32 256, 256
      %2609 = vsyncadd [#allocation5], %s2608
      %s2611 = sshll.u32 [#allocation6], 4
      %s2612 = int_to_ptr.vmem [resolvable:$true] %s2611
      %2614 = dma.vmem_to_hbm [thread:$0]  %s2612, 256, %s2, [#allocation5]
    $region17: #{tpu_custom_call.1} parent=1 // pred_fallthru
      _
    // Predicated region
    $region18: #{tpu_custom_call.1} parent=1 // pred_check
      _
    $region19: #{tpu_custom_call.1} parent=1 // pred_check_branch
      %2616 = sbr.rel (0) target = $region21
    $region20: #{tpu_custom_call.1} parent=1 // pred_region
      %2617 = dma.done [#allocation5], 256
    $region21: #{tpu_custom_call.1} parent=1 // pred_fallthru
      _
    %2618 = vsyncpa [#allocation4], 1
    %2619 = vsyncpa [#allocation5], 1

</llo_original>
